<compile_context>
chip_gen: v6e
topology: v6e:2x2x1
jax: 0.10.0
libtpu: 0.0.40
codegen_flags: <defaults>
</compile_context>

<pallas_src>
import numpy as np
import jax
import jax.numpy as jnp
from jax.experimental import pallas as pl
from jax.experimental.pallas import tpu as pltpu

# ----------------------- small config consistent with the module -----------------------
LATENT_DIM = 32
SEQ_LEN = 16
VOCAB = 4
INIT_L = max(SEQ_LEN // 8, 1)      # 2
L1 = 2 * INIT_L                    # 4   (ConvT k4 s2 p1 doubles length)
L2 = 2 * L1                        # 8
C0, C1, C2 = 256, 128, 64
BATCH = 2
BN_EPS = 1e-5

# roll-add/max trees need a power-of-two group count
assert L1 & (L1 - 1) == 0 and L2 & (L2 - 1) == 0 and VOCAB & (VOCAB - 1) == 0

_VMEM = pl.BlockSpec(memory_space=pltpu.MemorySpace.VMEM)


# ----------------------------------- fused Pallas kernel -------------------------------
def _generator_kernel(z_ref, fcw_ref, fcb_ref,
                      m1_ref, g1_ref, be1_ref,
                      m2_ref, g2_ref, be2_ref,
                      m3_ref, c3b_ref, out_ref):
    def dot_bf16(a, w_ref):
        # bf16 x bf16 -> f32 accumulate on the MXU
        return jnp.dot(a.astype(jnp.bfloat16), w_ref[...],
                       preferred_element_type=jnp.float32)

    def group_sum(v, block, total):
        # Circular roll-add tree along lanes: after log2(total/block) steps every
        # column j holds the sum over all columns with the same (j mod block) -- i.e.
        # the group reduce AND its broadcast back, with no mask matmul / reshape.
        s = v
        shift = block
        while shift < total:
            s = s + pltpu.roll(s, shift=shift, axis=1)
            shift *= 2
        return s

    def group_max(v, block, total):
        s = v
        shift = block
        while shift < total:
            s = jnp.maximum(s, pltpu.roll(s, shift=shift, axis=1))
            shift *= 2
        return s

    def bn_relu(x, L, C, g_row, be_row):
        # x: (B, L*C) channels-last flattened (column = l*C + c).
        # BatchNorm1d training-mode forward: stats over (B, L) per channel, biased var.
        n = float(x.shape[0] * L)
        total = L * C
        mean_f = group_sum(jnp.sum(x, axis=0, keepdims=True), C, total) / n   # (1, L*C)
        xc = x - mean_f
        var_f = group_sum(jnp.sum(xc * xc, axis=0, keepdims=True), C, total) / n
        invstd_f = jax.lax.rsqrt(var_f + BN_EPS)
        return jnp.maximum(xc * invstd_f * g_row + be_row, 0.0)

    # fc_init (weight columns pre-permuted -> output is channels-last (B, INIT_L*256))
    x = dot_bf16(z_ref[...], fcw_ref) + fcb_ref[...]

    # ConvTranspose1d(256->128, k4 s2 p1) as dense channels-last matmul + BN + ReLU.
    # Conv bias is a per-channel constant -> exactly cancelled by BN mean subtraction.
    x = bn_relu(dot_bf16(x, m1_ref), L1, C1, g1_ref[...], be1_ref[...])

    # ConvTranspose1d(128->64, k4 s2 p1) + BN + ReLU
    x = bn_relu(dot_bf16(x, m2_ref), L2, C2, g2_ref[...], be2_ref[...])

    # ConvTranspose1d(64->vocab, k4 s2 p1); columns pre-permuted to channel-major
    # (c*SEQ_LEN + l) with crop/pad-to-SEQ_LEN folded into the matrix/bias.
    logits = dot_bf16(x, m3_ref) + c3b_ref[...]            # (B, VOCAB*SEQ_LEN)

    # Softmax over vocab at each position: per-position max (roll-max tree, fixes the
    # underflow/NaN hazard of a global row max) and per-position denominator (roll-add
    # tree); denominator is in [1, VOCAB] so exact division is safe and cheap.
    total = VOCAB * SEQ_LEN
    m_pos = group_max(logits, SEQ_LEN, total)
    e = jnp.exp(logits - m_pos)
    denom = group_sum(e, SEQ_LEN, total)
    out_ref[...] = e / denom


@jax.jit
def cnn_generator_forward(z, d):
    B = z.shape[0]
    out2d = pl.pallas_call(
        _generator_kernel,
        out_shape=jax.ShapeDtypeStruct((B, VOCAB * SEQ_LEN), jnp.float32),
        in_specs=[_VMEM] * 11,
        out_specs=_VMEM,
    )(z, d['fcw'], d['fcb'],
      d['M1'], d['g1'], d['be1'],
      d['M2'], d['g2'], d['be2'],
      d['M3'], d['b3'])
    # row-major (B, VOCAB*SEQ_LEN) -> (B, VOCAB, SEQ_LEN): free metadata reshape
    return out2d.reshape(B, VOCAB, SEQ_LEN)


# ------------------------------------ offline glue --------------------------------------
def convT_dense_matrix(W, L_in, stride=2, padding=1):
    """ConvTranspose1d(weight W[c_in, c_out, k]) as a dense channels-last matrix."""
    C_in, C_out, K = W.shape
    L_out = (L_in - 1) * stride - 2 * padding + K
    M = np.zeros((L_in * C_in, L_out * C_out), np.float32)
    for l_in in range(L_in):
        for k in range(K):
            l_out = l_in * stride - padding + k
            if 0 <= l_out < L_out:
                M[l_in * C_in:(l_in + 1) * C_in,
                  l_out * C_out:(l_out + 1) * C_out] += W[:, :, k]
    return M, L_out


def init_params(key):
    ks = jax.random.split(key, 12)
    rn = lambda k, s, scale=0.1: scale * jax.random.normal(k, s, jnp.float32)
    p = {}
    p['fc_w'] = rn(ks[0], (LATENT_DIM, 256 * INIT_L))          # stored as (in, out)
    p['fc_b'] = rn(ks[1], (256 * INIT_L,))
    p['w1'] = rn(ks[2], (256, 128, 4));  p['b1'] = rn(ks[3], (128,))
    p['g1'] = 1.0 + rn(ks[4], (128,));   p['be1'] = rn(ks[5], (128,))
    p['w2'] = rn(ks[6], (128, 64, 4));   p['b2'] = rn(ks[7], (64,))
    p['g2'] = 1.0 + rn(ks[8], (64,));    p['be2'] = rn(ks[9], (64,))
    p['w3'] = rn(ks[10], (64, VOCAB, 4)); p['b3'] = rn(ks[11], (VOCAB,))
    return p


def prepare(p):
    """Host-side weight repackaging: all layout permutations / crop-pad folding are done
    offline; matmul weights are stored in bf16 (halved DMA, single-pass MXU)."""
    # fc: PyTorch out index = c*INIT_L + l  ->  channels-last l*256 + c
    fcw = np.asarray(p['fc_w'], np.float32)
    fcw_cl = fcw.reshape(LATENT_DIM, C0, INIT_L).transpose(0, 2, 1) \
                .reshape(LATENT_DIM, INIT_L * C0)
    fcb_cl = np.asarray(p['fc_b'], np.float32).reshape(C0, INIT_L).T.reshape(-1)

    M1, l1 = convT_dense_matrix(np.asarray(p['w1'], np.float32), INIT_L)
    M2, l2 = convT_dense_matrix(np.asarray(p['w2'], np.float32), l1)
    M3, l3 = convT_dense_matrix(np.asarray(p['w3'], np.float32), l2)
    assert (l1, l2) == (L1, L2)

    # last conv: permute columns to channel-major (c*SEQ_LEN + l) and fold the
    # crop/pad-to-SEQ_LEN into the matrix/bias (padded positions -> zero logits).
    b3 = np.asarray(p['b3'], np.float32)
    M3cm = np.zeros((L2 * C2, VOCAB * SEQ_LEN), np.float32)
    b3cm = np.zeros((VOCAB * SEQ_LEN,), np.float32)
    for c in range(VOCAB):
        for l in range(min(l3, SEQ_LEN)):
            M3cm[:, c * SEQ_LEN + l] = M3[:, l * VOCAB + c]
            b3cm[c * SEQ_LEN + l] = b3[c]

    bf16 = lambda a: jnp.asarray(a, jnp.bfloat16)
    row = lambda v: jnp.asarray(np.asarray(v, np.float32).reshape(1, -1))
    tile = lambda v, L: np.tile(np.asarray(v, np.float32), L)   # -> index l*C + c
    return dict(
        fcw=bf16(fcw_cl), fcb=row(fcb_cl),
        M1=bf16(M1), g1=row(tile(p['g1'], L1)), be1=row(tile(p['be1'], L1)),
        M2=bf16(M2), g2=row(tile(p['g2'], L2)), be2=row(tile(p['be2'], L2)),
        M3=bf16(M3cm), b3=row(b3cm),
    )


# --------------------------------- numpy reference -------------------------------------
def _bf16r(x):
    """Round to bf16 and back (matches the kernel's bf16 matmul-operand quantization)."""
    return np.asarray(jnp.asarray(np.asarray(x, np.float32)).astype(jnp.bfloat16)
                      .astype(jnp.float32))


def reference_np(z, p):
    z = np.asarray(z, np.float32)
    h = _bf16r(z) @ _bf16r(p['fc_w']) + np.asarray(p['fc_b'], np.float32)
    x = h.reshape(z.shape[0], 256, INIT_L)

    def convT(x, W, b):
        xq = _bf16r(x); Wq = _bf16r(W)
        Bn, C_in, L_in = xq.shape
        _, C_out, K = Wq.shape
        L_out = (L_in - 1) * 2 - 2 + K
        out = np.zeros((Bn, C_out, L_out), np.float32)
        for l_in in range(L_in):
            for k in range(K):
                lo = l_in * 2 - 1 + k
                if 0 <= lo < L_out:
                    out[:, :, lo] += np.einsum('bi,io->bo', xq[:, :, l_in], Wq[:, :, k])
        return out + np.asarray(b, np.float32)[None, :, None]

    def bn_relu_np(x, g, be):
        mean = x.mean(axis=(0, 2), keepdims=True)
        var = x.var(axis=(0, 2), keepdims=True)
        xh = (x - mean) / np.sqrt(var + BN_EPS)
        return np.maximum(xh * np.asarray(g)[None, :, None]
                          + np.asarray(be)[None, :, None], 0.0)

    x = convT(x, p['w1'], p['b1']); x = bn_relu_np(x, p['g1'], p['be1'])
    x = convT(x, p['w2'], p['b2']); x = bn_relu_np(x, p['g2'], p['be2'])
    x = convT(x, p['w3'], p['b3'])
    Lc = x.shape[2]
    if Lc > SEQ_LEN:
        x = x[:, :, :SEQ_LEN]
    elif Lc < SEQ_LEN:
        x = np.pad(x, ((0, 0), (0, 0), (0, SEQ_LEN - Lc)))
    xp = np.transpose(x, (0, 2, 1))
    e = np.exp(xp - xp.max(axis=2, keepdims=True))
    sm = e / e.sum(axis=2, keepdims=True)
    return np.transpose(sm, (0, 2, 1))


# ---------------------------------------- main ------------------------------------------
if __name__ == "__main__":
    key = jax.random.PRNGKey(0)
    kz, kp = jax.random.split(key)
    z = jax.random.normal(kz, (BATCH, LATENT_DIM), jnp.float32)
    params = init_params(kp)
    d = prepare(params)

    out = jax.block_until_ready(cnn_generator_forward(z, d))
    assert out.shape == (BATCH, VOCAB, SEQ_LEN), out.shape

    ref = reference_np(np.asarray(z), params)
    err = np.abs(np.asarray(out) - ref).max()
    assert np.allclose(np.asarray(out), ref, atol=1e-3, rtol=1e-3), f"mismatch {err}"
    print("KERNEL_OK")
</pallas_src>

<mosaic_0001>
module attributes {stable_mosaic.version = 11 : i64} {
  func.func @_generator_kernel(%arg0: memref<2x32xf32, #tpu.memory_space<vmem>>, %arg1: memref<32x512xbf16, #tpu.memory_space<vmem>>, %arg2: memref<1x512xf32, #tpu.memory_space<vmem>>, %arg3: memref<512x512xbf16, #tpu.memory_space<vmem>>, %arg4: memref<1x512xf32, #tpu.memory_space<vmem>>, %arg5: memref<1x512xf32, #tpu.memory_space<vmem>>, %arg6: memref<512x512xbf16, #tpu.memory_space<vmem>>, %arg7: memref<1x512xf32, #tpu.memory_space<vmem>>, %arg8: memref<1x512xf32, #tpu.memory_space<vmem>>, %arg9: memref<512x64xbf16, #tpu.memory_space<vmem>>, %arg10: memref<1x64xf32, #tpu.memory_space<vmem>>, %arg11: memref<2x64xf32, #tpu.memory_space<vmem>>) attributes {dimension_semantics = [], scalar_prefetch = 0 : i64, scratch_operands = 0 : i64, tpu.core_type = #tpu.core_type<tc>} {
    %c0 = arith.constant 0 : index
    %c0_0 = arith.constant 0 : index
    %0 = vector.load %arg0[%c0, %c0_0] : memref<2x32xf32, #tpu.memory_space<vmem>>, vector<2x32xf32>
    %1 = arith.truncf %0 : vector<2x32xf32> to vector<2x32xbf16>
    %c0_1 = arith.constant 0 : index
    %c0_2 = arith.constant 0 : index
    %2 = vector.load %arg1[%c0_1, %c0_2] : memref<32x512xbf16, #tpu.memory_space<vmem>>, vector<32x512xbf16>
    %cst = arith.constant dense<0.000000e+00> : vector<2x512xf32>
    %3 = tpu.matmul %1, %2, %cst {dimension_numbers = #tpu.dot_dimension_numbers<[1], [0], [0], [1], [0, 0, 1, 1], [], []>} : vector<2x32xbf16>, vector<32x512xbf16>, vector<2x512xf32> -> vector<2x512xf32>
    %c0_3 = arith.constant 0 : index
    %c0_4 = arith.constant 0 : index
    %4 = vector.load %arg2[%c0_3, %c0_4] : memref<1x512xf32, #tpu.memory_space<vmem>>, vector<1x512xf32>
    %5 = vector.broadcast %4 : vector<1x512xf32> to vector<2x512xf32>
    %6 = arith.addf %3, %5 : vector<2x512xf32>
    %7 = arith.truncf %6 : vector<2x512xf32> to vector<2x512xbf16>
    %c0_5 = arith.constant 0 : index
    %c0_6 = arith.constant 0 : index
    %8 = vector.load %arg3[%c0_5, %c0_6] : memref<512x512xbf16, #tpu.memory_space<vmem>>, vector<512x512xbf16>
    %cst_7 = arith.constant dense<0.000000e+00> : vector<2x512xf32>
    %9 = tpu.matmul %7, %8, %cst_7 {dimension_numbers = #tpu.dot_dimension_numbers<[1], [0], [0], [1], [0, 0, 1, 1], [], []>} : vector<2x512xbf16>, vector<512x512xbf16>, vector<2x512xf32> -> vector<2x512xf32>
    %c0_8 = arith.constant 0 : index
    %c0_9 = arith.constant 0 : index
    %10 = vector.load %arg4[%c0_8, %c0_9] : memref<1x512xf32, #tpu.memory_space<vmem>>, vector<1x512xf32>
    %c0_10 = arith.constant 0 : index
    %c0_11 = arith.constant 0 : index
    %11 = vector.load %arg5[%c0_10, %c0_11] : memref<1x512xf32, #tpu.memory_space<vmem>>, vector<1x512xf32>
    %cst_12 = arith.constant dense<0.000000e+00> : vector<512xf32>
    %12 = vector.multi_reduction <add>, %9, %cst_12 [0] : vector<2x512xf32> to vector<512xf32>
    %13 = vector.shape_cast %12 : vector<512xf32> to vector<1x512xf32>
    %c128_i32 = arith.constant 128 : i32
    %14 = tpu.dynamic_rotate %13 by %c128_i32 dim 1 : vector<1x512xf32>, i32 -> vector<1x512xf32>
    %15 = arith.addf %13, %14 : vector<1x512xf32>
    %c256_i32 = arith.constant 256 : i32
    %16 = tpu.dynamic_rotate %15 by %c256_i32 dim 1 : vector<1x512xf32>, i32 -> vector<1x512xf32>
    %17 = arith.addf %15, %16 : vector<1x512xf32>
    %cst_13 = arith.constant 8.000000e+00 : f32
    %18 = vector.broadcast %cst_13 : f32 to vector<1x512xf32>
    %19 = arith.divf %17, %18 : vector<1x512xf32>
    %20 = vector.broadcast %19 : vector<1x512xf32> to vector<2x512xf32>
    %21 = arith.subf %9, %20 : vector<2x512xf32>
    %22 = arith.mulf %21, %21 : vector<2x512xf32>
    %cst_14 = arith.constant dense<0.000000e+00> : vector<512xf32>
    %23 = vector.multi_reduction <add>, %22, %cst_14 [0] : vector<2x512xf32> to vector<512xf32>
    %24 = vector.shape_cast %23 : vector<512xf32> to vector<1x512xf32>
    %c128_i32_15 = arith.constant 128 : i32
    %25 = tpu.dynamic_rotate %24 by %c128_i32_15 dim 1 : vector<1x512xf32>, i32 -> vector<1x512xf32>
    %26 = arith.addf %24, %25 : vector<1x512xf32>
    %c256_i32_16 = arith.constant 256 : i32
    %27 = tpu.dynamic_rotate %26 by %c256_i32_16 dim 1 : vector<1x512xf32>, i32 -> vector<1x512xf32>
    %28 = arith.addf %26, %27 : vector<1x512xf32>
    %cst_17 = arith.constant 8.000000e+00 : f32
    %29 = vector.broadcast %cst_17 : f32 to vector<1x512xf32>
    %30 = arith.divf %28, %29 : vector<1x512xf32>
    %cst_18 = arith.constant 9.99999974E-6 : f32
    %31 = vector.broadcast %cst_18 : f32 to vector<1x512xf32>
    %32 = arith.addf %30, %31 : vector<1x512xf32>
    %33 = math.rsqrt %32 : vector<1x512xf32>
    %34 = vector.broadcast %33 : vector<1x512xf32> to vector<2x512xf32>
    %35 = arith.mulf %21, %34 : vector<2x512xf32>
    %36 = vector.broadcast %10 : vector<1x512xf32> to vector<2x512xf32>
    %37 = arith.mulf %35, %36 : vector<2x512xf32>
    %38 = vector.broadcast %11 : vector<1x512xf32> to vector<2x512xf32>
    %39 = arith.addf %37, %38 : vector<2x512xf32>
    %cst_19 = arith.constant 0.000000e+00 : f32
    %40 = vector.broadcast %cst_19 : f32 to vector<2x512xf32>
    %41 = arith.maximumf %39, %40 : vector<2x512xf32>
    %42 = arith.truncf %41 : vector<2x512xf32> to vector<2x512xbf16>
    %c0_20 = arith.constant 0 : index
    %c0_21 = arith.constant 0 : index
    %43 = vector.load %arg6[%c0_20, %c0_21] : memref<512x512xbf16, #tpu.memory_space<vmem>>, vector<512x512xbf16>
    %cst_22 = arith.constant dense<0.000000e+00> : vector<2x512xf32>
    %44 = tpu.matmul %42, %43, %cst_22 {dimension_numbers = #tpu.dot_dimension_numbers<[1], [0], [0], [1], [0, 0, 1, 1], [], []>} : vector<2x512xbf16>, vector<512x512xbf16>, vector<2x512xf32> -> vector<2x512xf32>
    %c0_23 = arith.constant 0 : index
    %c0_24 = arith.constant 0 : index
    %45 = vector.load %arg7[%c0_23, %c0_24] : memref<1x512xf32, #tpu.memory_space<vmem>>, vector<1x512xf32>
    %c0_25 = arith.constant 0 : index
    %c0_26 = arith.constant 0 : index
    %46 = vector.load %arg8[%c0_25, %c0_26] : memref<1x512xf32, #tpu.memory_space<vmem>>, vector<1x512xf32>
    %cst_27 = arith.constant dense<0.000000e+00> : vector<512xf32>
    %47 = vector.multi_reduction <add>, %44, %cst_27 [0] : vector<2x512xf32> to vector<512xf32>
    %48 = vector.shape_cast %47 : vector<512xf32> to vector<1x512xf32>
    %c64_i32 = arith.constant 64 : i32
    %49 = tpu.dynamic_rotate %48 by %c64_i32 dim 1 : vector<1x512xf32>, i32 -> vector<1x512xf32>
    %50 = arith.addf %48, %49 : vector<1x512xf32>
    %c128_i32_28 = arith.constant 128 : i32
    %51 = tpu.dynamic_rotate %50 by %c128_i32_28 dim 1 : vector<1x512xf32>, i32 -> vector<1x512xf32>
    %52 = arith.addf %50, %51 : vector<1x512xf32>
    %c256_i32_29 = arith.constant 256 : i32
    %53 = tpu.dynamic_rotate %52 by %c256_i32_29 dim 1 : vector<1x512xf32>, i32 -> vector<1x512xf32>
    %54 = arith.addf %52, %53 : vector<1x512xf32>
    %cst_30 = arith.constant 1.600000e+01 : f32
    %55 = vector.broadcast %cst_30 : f32 to vector<1x512xf32>
    %56 = arith.divf %54, %55 : vector<1x512xf32>
    %57 = vector.broadcast %56 : vector<1x512xf32> to vector<2x512xf32>
    %58 = arith.subf %44, %57 : vector<2x512xf32>
    %59 = arith.mulf %58, %58 : vector<2x512xf32>
    %cst_31 = arith.constant dense<0.000000e+00> : vector<512xf32>
    %60 = vector.multi_reduction <add>, %59, %cst_31 [0] : vector<2x512xf32> to vector<512xf32>
    %61 = vector.shape_cast %60 : vector<512xf32> to vector<1x512xf32>
    %c64_i32_32 = arith.constant 64 : i32
    %62 = tpu.dynamic_rotate %61 by %c64_i32_32 dim 1 : vector<1x512xf32>, i32 -> vector<1x512xf32>
    %63 = arith.addf %61, %62 : vector<1x512xf32>
    %c128_i32_33 = arith.constant 128 : i32
    %64 = tpu.dynamic_rotate %63 by %c128_i32_33 dim 1 : vector<1x512xf32>, i32 -> vector<1x512xf32>
    %65 = arith.addf %63, %64 : vector<1x512xf32>
    %c256_i32_34 = arith.constant 256 : i32
    %66 = tpu.dynamic_rotate %65 by %c256_i32_34 dim 1 : vector<1x512xf32>, i32 -> vector<1x512xf32>
    %67 = arith.addf %65, %66 : vector<1x512xf32>
    %cst_35 = arith.constant 1.600000e+01 : f32
    %68 = vector.broadcast %cst_35 : f32 to vector<1x512xf32>
    %69 = arith.divf %67, %68 : vector<1x512xf32>
    %cst_36 = arith.constant 9.99999974E-6 : f32
    %70 = vector.broadcast %cst_36 : f32 to vector<1x512xf32>
    %71 = arith.addf %69, %70 : vector<1x512xf32>
    %72 = math.rsqrt %71 : vector<1x512xf32>
    %73 = vector.broadcast %72 : vector<1x512xf32> to vector<2x512xf32>
    %74 = arith.mulf %58, %73 : vector<2x512xf32>
    %75 = vector.broadcast %45 : vector<1x512xf32> to vector<2x512xf32>
    %76 = arith.mulf %74, %75 : vector<2x512xf32>
    %77 = vector.broadcast %46 : vector<1x512xf32> to vector<2x512xf32>
    %78 = arith.addf %76, %77 : vector<2x512xf32>
    %cst_37 = arith.constant 0.000000e+00 : f32
    %79 = vector.broadcast %cst_37 : f32 to vector<2x512xf32>
    %80 = arith.maximumf %78, %79 : vector<2x512xf32>
    %81 = arith.truncf %80 : vector<2x512xf32> to vector<2x512xbf16>
    %c0_38 = arith.constant 0 : index
    %c0_39 = arith.constant 0 : index
    %82 = vector.load %arg9[%c0_38, %c0_39] : memref<512x64xbf16, #tpu.memory_space<vmem>>, vector<512x64xbf16>
    %cst_40 = arith.constant dense<0.000000e+00> : vector<2x64xf32>
    %83 = tpu.matmul %81, %82, %cst_40 {dimension_numbers = #tpu.dot_dimension_numbers<[1], [0], [0], [1], [0, 0, 1, 1], [], []>} : vector<2x512xbf16>, vector<512x64xbf16>, vector<2x64xf32> -> vector<2x64xf32>
    %c0_41 = arith.constant 0 : index
    %c0_42 = arith.constant 0 : index
    %84 = vector.load %arg10[%c0_41, %c0_42] : memref<1x64xf32, #tpu.memory_space<vmem>>, vector<1x64xf32>
    %85 = vector.broadcast %84 : vector<1x64xf32> to vector<2x64xf32>
    %86 = arith.addf %83, %85 : vector<2x64xf32>
    %c16_i32 = arith.constant 16 : i32
    %87 = tpu.dynamic_rotate %86 by %c16_i32 dim 1 : vector<2x64xf32>, i32 -> vector<2x64xf32>
    %88 = arith.maximumf %86, %87 : vector<2x64xf32>
    %c32_i32 = arith.constant 32 : i32
    %89 = tpu.dynamic_rotate %88 by %c32_i32 dim 1 : vector<2x64xf32>, i32 -> vector<2x64xf32>
    %90 = arith.maximumf %88, %89 : vector<2x64xf32>
    %91 = arith.subf %86, %90 : vector<2x64xf32>
    %92 = math.exp %91 : vector<2x64xf32>
    %c16_i32_43 = arith.constant 16 : i32
    %93 = tpu.dynamic_rotate %92 by %c16_i32_43 dim 1 : vector<2x64xf32>, i32 -> vector<2x64xf32>
    %94 = arith.addf %92, %93 : vector<2x64xf32>
    %c32_i32_44 = arith.constant 32 : i32
    %95 = tpu.dynamic_rotate %94 by %c32_i32_44 dim 1 : vector<2x64xf32>, i32 -> vector<2x64xf32>
    %96 = arith.addf %94, %95 : vector<2x64xf32>
    %97 = arith.divf %92, %96 : vector<2x64xf32>
    %c0_45 = arith.constant 0 : index
    %c0_46 = arith.constant 0 : index
    %98 = vector.load %arg11[%c0_45, %c0_46] : memref<2x64xf32, #tpu.memory_space<vmem>>, vector<2x64xf32>
    tpu.vector_store %arg11[%c0_45, %c0_46], %97 {strides = array<i32>} : memref<2x64xf32, #tpu.memory_space<vmem>>, vector<2x64xf32>,
    return
  }
}

</mosaic_0001>

<llo_original>
// kernel: cnn_generator_forward.1
$region0: #{cnn_generator_forward.1}
  #allocation0 [shape = 'u32[]', space=smem, size = 0x4, offset = 0x4, fixed_abs, tag = 'smem constant byte address 0x4 - core index']
  #allocation1 [shape = 'u32[144,128]{1,0:T(1,128)}', space=vmem, size = 0x12000, scoped, tag = 'internal scratch']
  %s0 = inlined_call_operand.vmem [shape: f32[2,32], index: 0, kind: input, shape index: {}]
  %s1 = inlined_call_operand.vmem [shape: bf16[32,512], index: 1, kind: input, shape index: {}]
  %s2 = inlined_call_operand.vmem [shape: f32[1,512], index: 2, kind: input, shape index: {}]
  %s3 = inlined_call_operand.hbm [shape: bf16[512,512], index: 3, kind: input, shape index: {}]
  %s4 = inlined_call_operand.vmem [shape: f32[1,512], index: 4, kind: input, shape index: {}]
  %s5 = inlined_call_operand.vmem [shape: f32[1,512], index: 5, kind: input, shape index: {}]
  %s6 = inlined_call_operand.hbm [shape: bf16[512,512], index: 6, kind: input, shape index: {}]
  %s7 = inlined_call_operand.vmem [shape: f32[1,512], index: 7, kind: input, shape index: {}]
  %s8 = inlined_call_operand.vmem [shape: f32[1,512], index: 8, kind: input, shape index: {}]
  %s9 = inlined_call_operand.vmem [shape: bf16[512,64], index: 9, kind: input, shape index: {}]
  %s10 = inlined_call_operand.vmem [shape: f32[1,64], index: 10, kind: input, shape index: {}]
  %s11 = inlined_call_operand.vmem [shape: f32[2,64], index: 11, kind: output, shape index: {}]
  %s12 = sld [smem:[#allocation0]]
  $region62: #{cnn_generator_forward.1} parent=0
    _
  %s14 = ssub.s32 1, %s12
  %s15 = scalar_select 0, %s14, %s12
  $region1: #{cnn_generator_forward.1} parent=0
    #allocation2 [shape = 'u8[524288]{0}', space=vmem, size = 0x80000, scoped, tag = 'input window, operand 3, single buffered']
    #allocation3 [shape = 's32[1]{0}', space=sflag, size = 0x4, scoped, tag = 'scoped memory for cnn_generator_forward.1']
    #allocation4 [shape = 'u8[524288]{0}', space=vmem, size = 0x80000, scoped, tag = 'input window, operand 6, single buffered']
    #allocation5 [shape = 's32[1]{0}', space=sflag, size = 0x4, scoped, tag = 'scoped memory for cnn_generator_forward.1']
    %16 = vsyncpa [#allocation3], 0
    %17 = vsyncpa [#allocation5], 0
    // Predicated region
    $region2: #{cnn_generator_forward.1} parent=1 // pred_check
      _
    $region3: #{cnn_generator_forward.1} parent=1 // pred_check_branch
      %19 = sbr.rel (0) target = $region5
    $region4: #{cnn_generator_forward.1} parent=1 // pred_region
      _
    $region5: #{cnn_generator_forward.1} parent=1 // pred_fallthru
      _
    // Predicated region
    $region6: #{cnn_generator_forward.1} parent=1 // pred_check
      _
    $region7: #{cnn_generator_forward.1} parent=1 // pred_check_branch
      %21 = sbr.rel (0) target = $region9
    $region8: #{cnn_generator_forward.1} parent=1 // pred_region
      _
    $region9: #{cnn_generator_forward.1} parent=1 // pred_fallthru
      _
    // Predicated region
    $region10: #{cnn_generator_forward.1} parent=1 // pred_check
      _
    $region11: #{cnn_generator_forward.1} parent=1 // pred_check_branch
      %23 = sbr.rel (0) target = $region13
    $region12: #{cnn_generator_forward.1} parent=1 // pred_region
      _
    $region13: #{cnn_generator_forward.1} parent=1 // pred_fallthru
      _
    // Predicated region
    $region14: #{cnn_generator_forward.1} parent=1 // pred_check
      _
    $region15: #{cnn_generator_forward.1} parent=1 // pred_check_branch
      %25 = sbr.rel (0) target = $region17
    $region16: #{cnn_generator_forward.1} parent=1 // pred_region
      %s27 = ssub.s32 16384, 16384
      %28 = vsyncadd [#allocation3], %s27
      %s29 = sshll.u32 [#allocation2], 4
      %s30 = int_to_ptr.vmem [resolvable:$true] %s29
      %35 = dma.hbm_to_vmem [thread:$0]  %s3, 16384, %s30, [#allocation3], 256, 256, 16
    $region17: #{cnn_generator_forward.1} parent=1 // pred_fallthru
      _
    // Predicated region
    $region18: #{cnn_generator_forward.1} parent=1 // pred_check
      _
    $region19: #{cnn_generator_forward.1} parent=1 // pred_check_branch
      %37 = sbr.rel (0) target = $region21
    $region20: #{cnn_generator_forward.1} parent=1 // pred_region
      _
    $region21: #{cnn_generator_forward.1} parent=1 // pred_fallthru
      _
    // Predicated region
    $region22: #{cnn_generator_forward.1} parent=1 // pred_check
      _
    $region23: #{cnn_generator_forward.1} parent=1 // pred_check_branch
      %39 = sbr.rel (0) target = $region25
    $region24: #{cnn_generator_forward.1} parent=1 // pred_region
      _
    $region25: #{cnn_generator_forward.1} parent=1 // pred_fallthru
      _
    // Predicated region
    $region26: #{cnn_generator_forward.1} parent=1 // pred_check
      _
    $region27: #{cnn_generator_forward.1} parent=1 // pred_check_branch
      %41 = sbr.rel (0) target = $region29
    $region28: #{cnn_generator_forward.1} parent=1 // pred_region
      %s43 = ssub.s32 16384, 16384
      %44 = vsyncadd [#allocation5], %s43
      %s45 = sshll.u32 [#allocation4], 4
      %s46 = int_to_ptr.vmem [resolvable:$true] %s45
      %51 = dma.hbm_to_vmem [thread:$0]  %s6, 16384, %s46, [#allocation5], 256, 256, 16
    $region29: #{cnn_generator_forward.1} parent=1 // pred_fallthru
      _
    // Predicated region
    $region30: #{cnn_generator_forward.1} parent=1 // pred_check
      _
    $region31: #{cnn_generator_forward.1} parent=1 // pred_check_branch
      %53 = sbr.rel (0) target = $region33
    $region32: #{cnn_generator_forward.1} parent=1 // pred_region
      _
    $region33: #{cnn_generator_forward.1} parent=1 // pred_fallthru
      _
    // Predicated region
    $region34: #{cnn_generator_forward.1} parent=1 // pred_check
      _
    $region35: #{cnn_generator_forward.1} parent=1 // pred_check_branch
      %55 = sbr.rel (0) target = $region37
    $region36: #{cnn_generator_forward.1} parent=1 // pred_region
      _
    $region37: #{cnn_generator_forward.1} parent=1 // pred_fallthru
      _
    // Predicated region
    $region38: #{cnn_generator_forward.1} parent=1 // pred_check
      _
    $region39: #{cnn_generator_forward.1} parent=1 // pred_check_branch
      %57 = sbr.rel (0) target = $region41
    $region40: #{cnn_generator_forward.1} parent=1 // pred_region
      _
    $region41: #{cnn_generator_forward.1} parent=1 // pred_fallthru
      _
    // Predicated region
    $region42: #{cnn_generator_forward.1} parent=1 // pred_check
      _
    $region43: #{cnn_generator_forward.1} parent=1 // pred_check_branch
      %59 = sbr.rel (0) target = $region45
    $region44: #{cnn_generator_forward.1} parent=1 // pred_region
      _
    $region45: #{cnn_generator_forward.1} parent=1 // pred_fallthru
      _
    // Predicated region
    $region46: #{cnn_generator_forward.1} parent=1 // pred_check
      _
    $region47: #{cnn_generator_forward.1} parent=1 // pred_check_branch
      %61 = sbr.rel (0) target = $region49
    $region48: #{cnn_generator_forward.1} parent=1 // pred_region
      %62 = dma.done [#allocation3], 16384
    $region49: #{cnn_generator_forward.1} parent=1 // pred_fallthru
      _
    // Predicated region
    $region50: #{cnn_generator_forward.1} parent=1 // pred_check
      _
    $region51: #{cnn_generator_forward.1} parent=1 // pred_check_branch
      %64 = sbr.rel (0) target = $region53
    $region52: #{cnn_generator_forward.1} parent=1 // pred_region
      %65 = dma.done [#allocation5], 16384
    $region53: #{cnn_generator_forward.1} parent=1 // pred_fallthru
      _
    %v67 = vld [vmem:[%s0] sm:$0x3]
    %v68 = vpack.c.bf16 %v67, %v67
    %v69 = vld [vmem:[%s1] sm:$0xff]
    %v70 = vld [vmem:[%s1 + $0x8] sm:$0xff]
    %v71 = vld [vmem:[%s1 + $0x10] sm:$0xff]
    %v72 = vld [vmem:[%s1 + $0x18] sm:$0xff]
    %v73 = vld [vmem:[%s1 + $0x20] sm:$0xff]
    %v74 = vld [vmem:[%s1 + $0x28] sm:$0xff]
    %v75 = vld [vmem:[%s1 + $0x30] sm:$0xff]
    %v76 = vld [vmem:[%s1 + $0x38] sm:$0xff]
    %v77 = vld [vmem:[%s2] sm:$0xf]
    %v79 = vlaneseq
    %v80 = vshrl.u32 %v79, 7
    %v81 = vsub.s32 0, %v80
    %v82 = vrot.slane %v77, %v81
    %v83 = vlaneseq
    %v84 = vshrl.u32 %v83, 7
    %v85 = vsub.s32 1, %v84
    %v86 = vrot.slane %v77, %v85
    %v87 = vlaneseq
    %v88 = vshrl.u32 %v87, 7
    %v89 = vsub.s32 2, %v88
    %v90 = vrot.slane %v77, %v89
    %v91 = vlaneseq
    %v92 = vshrl.u32 %v91, 7
    %v93 = vsub.s32 3, %v92
    %v94 = vrot.slane %v77, %v93
    %v107 = vunpack.c.l.b16 %v69
    %v108 = vunpack.c.h.b16 %v69
    %v109 = vunpack.c.l.b16 %v70
    %v110 = vunpack.c.h.b16 %v70
    %v111 = vunpack.c.l.b16 %v71
    %v112 = vunpack.c.h.b16 %v71
    %v113 = vunpack.c.l.b16 %v72
    %v114 = vunpack.c.h.b16 %v72
    %v115 = vunpack.c.l.b16 %v73
    %v116 = vunpack.c.h.b16 %v73
    %v117 = vunpack.c.l.b16 %v74
    %v118 = vunpack.c.h.b16 %v74
    %v119 = vunpack.c.l.b16 %v75
    %v120 = vunpack.c.h.b16 %v75
    %v121 = vunpack.c.l.b16 %v76
    %v122 = vunpack.c.h.b16 %v76
    %v123 = vpack.c.b16 %v111, %v107
    %v124 = vpack.c.b16 %v112, %v108
    %v125 = vpack.c.b16 %v113, %v109
    %v126 = vpack.c.b16 %v114, %v110
    %v127 = vpack.c.b16 %v119, %v115
    %v128 = vpack.c.b16 %v120, %v116
    %v129 = vpack.c.b16 %v121, %v117
    %v130 = vpack.c.b16 %v122, %v118
    %vm139 = vcmask 261120
    %v141 = vsel %vm139, %v68, 0
    %143 = vmatprep.subr.bf16.mxu0 0
    %144 = vmatpush1.bf16.msra.mxu0 0
    %145 = vmatprep.subr.bf16.mxu0 0
    %146 = vmatpush1.bf16.msra.mxu0 0
    %147 = vmatprep.subr.bf16.mxu0 0
    %148 = vmatpush1.bf16.msra.mxu0 0
    %149 = vmatprep.subr.bf16.mxu0 0
    %150 = vmatpush1.bf16.msra.mxu0 0
    %151 = vmatprep.subr.bf16.mxu0 0
    %152 = vmatpush1.bf16.msra.mxu0 0
    %153 = vmatprep.subr.bf16.mxu0 0
    %154 = vmatpush1.bf16.msra.mxu0 0
    %155 = vmatprep.subr.bf16.mxu0 %v128
    %156 = vmatpush1.bf16.msra.mxu0 %v127
    %157 = vmatprep.subr.bf16.mxu0 %v124
    %158 = vmatpush1.bf16.msra.mxu0 %v123
    %159 = vmatprep.subr.bf16.mxu0 0
    %160 = vmatpush2.bf16.msra.mxu0 0
    %161 = vmatprep.subr.bf16.mxu0 0
    %162 = vmatpush2.bf16.msra.mxu0 0
    %163 = vmatprep.subr.bf16.mxu0 0
    %164 = vmatpush2.bf16.msra.mxu0 0
    %165 = vmatprep.subr.bf16.mxu0 0
    %166 = vmatpush2.bf16.msra.mxu0 0
    %167 = vmatprep.subr.bf16.mxu0 0
    %168 = vmatpush2.bf16.msra.mxu0 0
    %169 = vmatprep.subr.bf16.mxu0 0
    %170 = vmatpush2.bf16.msra.mxu0 0
    %171 = vmatprep.subr.bf16.mxu0 0
    %172 = vmatpush2.bf16.msra.mxu0 0
    %173 = vmatprep.subr.bf16.mxu0 0
    %174 = vmatpush2.bf16.msra.mxu0 0
    %175 = vmatprep.mubr.bf16.mxu0 0
    %176 = vmatmul.mubr.bf16.gmra.mxu0 %v141
    %v177 = vpop.f32.mrf.mxu0
    %v178 = vadd.f32 %v82, %v177
    %v179 = vpop.f32.mrf.mxu0
    %v180 = vadd.f32 %v86, %v179
    %v181 = vpop.f32.mrf.mxu0
    %v182 = vpop.f32.mrf.mxu0
    %183 = vdwg.mxu0
    %184 = vmatprep.subr.bf16.mxu0 0
    %185 = vmatpush1.bf16.msra.mxu0 0
    %186 = vmatprep.subr.bf16.mxu0 0
    %187 = vmatpush1.bf16.msra.mxu0 0
    %188 = vmatprep.subr.bf16.mxu0 0
    %189 = vmatpush1.bf16.msra.mxu0 0
    %190 = vmatprep.subr.bf16.mxu0 0
    %191 = vmatpush1.bf16.msra.mxu0 0
    %192 = vmatprep.subr.bf16.mxu0 0
    %193 = vmatpush1.bf16.msra.mxu0 0
    %194 = vmatprep.subr.bf16.mxu0 0
    %195 = vmatpush1.bf16.msra.mxu0 0
    %196 = vmatprep.subr.bf16.mxu0 %v130
    %197 = vmatpush1.bf16.msra.mxu0 %v129
    %198 = vmatprep.subr.bf16.mxu0 %v126
    %199 = vmatpush1.bf16.msra.mxu0 %v125
    %200 = vmatprep.subr.bf16.mxu0 0
    %201 = vmatpush2.bf16.msra.mxu0 0
    %202 = vmatprep.subr.bf16.mxu0 0
    %203 = vmatpush2.bf16.msra.mxu0 0
    %204 = vmatprep.subr.bf16.mxu0 0
    %205 = vmatpush2.bf16.msra.mxu0 0
    %206 = vmatprep.subr.bf16.mxu0 0
    %207 = vmatpush2.bf16.msra.mxu0 0
    %208 = vmatprep.subr.bf16.mxu0 0
    %209 = vmatpush2.bf16.msra.mxu0 0
    %210 = vmatprep.subr.bf16.mxu0 0
    %211 = vmatpush2.bf16.msra.mxu0 0
    %212 = vmatprep.subr.bf16.mxu0 0
    %213 = vmatpush2.bf16.msra.mxu0 0
    %214 = vmatprep.subr.bf16.mxu0 0
    %215 = vmatpush2.bf16.msra.mxu0 0
    %216 = vmatprep.mubr.bf16.mxu0 0
    %217 = vmatmul.mubr.bf16.gmra.mxu0 %v141
    %v218 = vpop.f32.mrf.mxu0
    %v219 = vadd.f32 %v90, %v218
    %v220 = vpop.f32.mrf.mxu0
    %v221 = vadd.f32 %v94, %v220
    %v222 = vpop.f32.mrf.mxu0
    %v223 = vpop.f32.mrf.mxu0
    %224 = vdwg.mxu0
    %v225 = vpack.c.bf16 %v178, %v178
    %v226 = vpack.c.bf16 %v180, %v180
    %v227 = vpack.c.bf16 %v219, %v219
    %v228 = vpack.c.bf16 %v221, %v221
    %v229 = vld [vmem:[#allocation2] sm:$0xff]
    %v230 = vld [vmem:[#allocation2 + $0x8] sm:$0xff]
    %v231 = vld [vmem:[#allocation2 + $0x10] sm:$0xff]
    %v232 = vld [vmem:[#allocation2 + $0x18] sm:$0xff]
    %v233 = vld [vmem:[#allocation2 + $0x20] sm:$0xff]
    %v234 = vld [vmem:[#allocation2 + $0x28] sm:$0xff]
    %v235 = vld [vmem:[#allocation2 + $0x30] sm:$0xff]
    %v236 = vld [vmem:[#allocation2 + $0x38] sm:$0xff]
    %v237 = vld [vmem:[#allocation2 + $0x40] sm:$0xff]
    %v238 = vld [vmem:[#allocation2 + $0x48] sm:$0xff]
    %v239 = vld [vmem:[#allocation2 + $0x50] sm:$0xff]
    %v240 = vld [vmem:[#allocation2 + $0x58] sm:$0xff]
    %v241 = vld [vmem:[#allocation2 + $0x60] sm:$0xff]
    %v242 = vld [vmem:[#allocation2 + $0x68] sm:$0xff]
    %v243 = vld [vmem:[#allocation2 + $0x70] sm:$0xff]
    %v244 = vld [vmem:[#allocation2 + $0x78] sm:$0xff]
    %v245 = vld [vmem:[#allocation2 + $0x80] sm:$0xff]
    %v246 = vld [vmem:[#allocation2 + $0x88] sm:$0xff]
    %v247 = vld [vmem:[#allocation2 + $0x90] sm:$0xff]
    %v248 = vld [vmem:[#allocation2 + $0x98] sm:$0xff]
    %v249 = vld [vmem:[#allocation2 + $0xa0] sm:$0xff]
    %v250 = vld [vmem:[#allocation2 + $0xa8] sm:$0xff]
    %v251 = vld [vmem:[#allocation2 + $0xb0] sm:$0xff]
    %v252 = vld [vmem:[#allocation2 + $0xb8] sm:$0xff]
    %v253 = vld [vmem:[#allocation2 + $0xc0] sm:$0xff]
    %v254 = vld [vmem:[#allocation2 + $0xc8] sm:$0xff]
    %v255 = vld [vmem:[#allocation2 + $0xd0] sm:$0xff]
    %v256 = vld [vmem:[#allocation2 + $0xd8] sm:$0xff]
    %v257 = vld [vmem:[#allocation2 + $0xe0] sm:$0xff]
    %v258 = vld [vmem:[#allocation2 + $0xe8] sm:$0xff]
    %v259 = vld [vmem:[#allocation2 + $0xf0] sm:$0xff]
    %v260 = vld [vmem:[#allocation2 + $0xf8] sm:$0xff]
    %v261 = vld [vmem:[#allocation2 + $0x100] sm:$0xff]
    %v262 = vld [vmem:[#allocation2 + $0x108] sm:$0xff]
    %v263 = vld [vmem:[#allocation2 + $0x110] sm:$0xff]
    %v264 = vld [vmem:[#allocation2 + $0x118] sm:$0xff]
    %v265 = vld [vmem:[#allocation2 + $0x120] sm:$0xff]
    %v266 = vld [vmem:[#allocation2 + $0x128] sm:$0xff]
    %v267 = vld [vmem:[#allocation2 + $0x130] sm:$0xff]
    %v268 = vld [vmem:[#allocation2 + $0x138] sm:$0xff]
    %v269 = vld [vmem:[#allocation2 + $0x140] sm:$0xff]
    %v270 = vld [vmem:[#allocation2 + $0x148] sm:$0xff]
    %v271 = vld [vmem:[#allocation2 + $0x150] sm:$0xff]
    %v272 = vld [vmem:[#allocation2 + $0x158] sm:$0xff]
    %v273 = vld [vmem:[#allocation2 + $0x160] sm:$0xff]
    %v274 = vld [vmem:[#allocation2 + $0x168] sm:$0xff]
    %v275 = vld [vmem:[#allocation2 + $0x170] sm:$0xff]
    %v276 = vld [vmem:[#allocation2 + $0x178] sm:$0xff]
    %v277 = vld [vmem:[#allocation2 + $0x180] sm:$0xff]
    %v278 = vld [vmem:[#allocation2 + $0x188] sm:$0xff]
    %v279 = vld [vmem:[#allocation2 + $0x190] sm:$0xff]
    %v280 = vld [vmem:[#allocation2 + $0x198] sm:$0xff]
    %v281 = vld [vmem:[#allocation2 + $0x1a0] sm:$0xff]
    %v282 = vld [vmem:[#allocation2 + $0x1a8] sm:$0xff]
    %v283 = vld [vmem:[#allocation2 + $0x1b0] sm:$0xff]
    %v284 = vld [vmem:[#allocation2 + $0x1b8] sm:$0xff]
    %v285 = vld [vmem:[#allocation2 + $0x1c0] sm:$0xff]
    %v286 = vld [vmem:[#allocation2 + $0x1c8] sm:$0xff]
    %v287 = vld [vmem:[#allocation2 + $0x1d0] sm:$0xff]
    %v288 = vld [vmem:[#allocation2 + $0x1d8] sm:$0xff]
    %v289 = vld [vmem:[#allocation2 + $0x1e0] sm:$0xff]
    %v290 = vld [vmem:[#allocation2 + $0x1e8] sm:$0xff]
    %v291 = vld [vmem:[#allocation2 + $0x1f0] sm:$0xff]
    %v292 = vld [vmem:[#allocation2 + $0x1f8] sm:$0xff]
    %v293 = vld [vmem:[#allocation2 + $0x200] sm:$0xff]
    %v294 = vld [vmem:[#allocation2 + $0x208] sm:$0xff]
    %v295 = vld [vmem:[#allocation2 + $0x210] sm:$0xff]
    %v296 = vld [vmem:[#allocation2 + $0x218] sm:$0xff]
    %v297 = vld [vmem:[#allocation2 + $0x220] sm:$0xff]
    %v298 = vld [vmem:[#allocation2 + $0x228] sm:$0xff]
    %v299 = vld [vmem:[#allocation2 + $0x230] sm:$0xff]
    %v300 = vld [vmem:[#allocation2 + $0x238] sm:$0xff]
    %v301 = vld [vmem:[#allocation2 + $0x240] sm:$0xff]
    %v302 = vld [vmem:[#allocation2 + $0x248] sm:$0xff]
    %v303 = vld [vmem:[#allocation2 + $0x250] sm:$0xff]
    %v304 = vld [vmem:[#allocation2 + $0x258] sm:$0xff]
    %v305 = vld [vmem:[#allocation2 + $0x260] sm:$0xff]
    %v306 = vld [vmem:[#allocation2 + $0x268] sm:$0xff]
    %v307 = vld [vmem:[#allocation2 + $0x270] sm:$0xff]
    %v308 = vld [vmem:[#allocation2 + $0x278] sm:$0xff]
    %v309 = vld [vmem:[#allocation2 + $0x280] sm:$0xff]
    %v310 = vld [vmem:[#allocation2 + $0x288] sm:$0xff]
    %v311 = vld [vmem:[#allocation2 + $0x290] sm:$0xff]
    %v312 = vld [vmem:[#allocation2 + $0x298] sm:$0xff]
    %v313 = vld [vmem:[#allocation2 + $0x2a0] sm:$0xff]
    %v314 = vld [vmem:[#allocation2 + $0x2a8] sm:$0xff]
    %v315 = vld [vmem:[#allocation2 + $0x2b0] sm:$0xff]
    %v316 = vld [vmem:[#allocation2 + $0x2b8] sm:$0xff]
    %v317 = vld [vmem:[#allocation2 + $0x2c0] sm:$0xff]
    %v318 = vld [vmem:[#allocation2 + $0x2c8] sm:$0xff]
    %v319 = vld [vmem:[#allocation2 + $0x2d0] sm:$0xff]
    %v320 = vld [vmem:[#allocation2 + $0x2d8] sm:$0xff]
    %v321 = vld [vmem:[#allocation2 + $0x2e0] sm:$0xff]
    %v322 = vld [vmem:[#allocation2 + $0x2e8] sm:$0xff]
    %v323 = vld [vmem:[#allocation2 + $0x2f0] sm:$0xff]
    %v324 = vld [vmem:[#allocation2 + $0x2f8] sm:$0xff]
    %v325 = vld [vmem:[#allocation2 + $0x300] sm:$0xff]
    %v326 = vld [vmem:[#allocation2 + $0x308] sm:$0xff]
    %v327 = vld [vmem:[#allocation2 + $0x310] sm:$0xff]
    %v328 = vld [vmem:[#allocation2 + $0x318] sm:$0xff]
    %v329 = vld [vmem:[#allocation2 + $0x320] sm:$0xff]
    %v330 = vld [vmem:[#allocation2 + $0x328] sm:$0xff]
    %v331 = vld [vmem:[#allocation2 + $0x330] sm:$0xff]
    %v332 = vld [vmem:[#allocation2 + $0x338] sm:$0xff]
    %v333 = vld [vmem:[#allocation2 + $0x340] sm:$0xff]
    %v334 = vld [vmem:[#allocation2 + $0x348] sm:$0xff]
    %v335 = vld [vmem:[#allocation2 + $0x350] sm:$0xff]
    %v336 = vld [vmem:[#allocation2 + $0x358] sm:$0xff]
    %v337 = vld [vmem:[#allocation2 + $0x360] sm:$0xff]
    %v338 = vld [vmem:[#allocation2 + $0x368] sm:$0xff]
    %v339 = vld [vmem:[#allocation2 + $0x370] sm:$0xff]
    %v340 = vld [vmem:[#allocation2 + $0x378] sm:$0xff]
    %v341 = vld [vmem:[#allocation2 + $0x380] sm:$0xff]
    %v342 = vld [vmem:[#allocation2 + $0x388] sm:$0xff]
    %v343 = vld [vmem:[#allocation2 + $0x390] sm:$0xff]
    %v344 = vld [vmem:[#allocation2 + $0x398] sm:$0xff]
    %v345 = vld [vmem:[#allocation2 + $0x3a0] sm:$0xff]
    %v346 = vld [vmem:[#allocation2 + $0x3a8] sm:$0xff]
    %v347 = vld [vmem:[#allocation2 + $0x3b0] sm:$0xff]
    %v348 = vld [vmem:[#allocation2 + $0x3b8] sm:$0xff]
    %v349 = vld [vmem:[#allocation2 + $0x3c0] sm:$0xff]
    %v350 = vld [vmem:[#allocation2 + $0x3c8] sm:$0xff]
    %v351 = vld [vmem:[#allocation2 + $0x3d0] sm:$0xff]
    %v352 = vld [vmem:[#allocation2 + $0x3d8] sm:$0xff]
    %v353 = vld [vmem:[#allocation2 + $0x3e0] sm:$0xff]
    %v354 = vld [vmem:[#allocation2 + $0x3e8] sm:$0xff]
    %v355 = vld [vmem:[#allocation2 + $0x3f0] sm:$0xff]
    %v356 = vld [vmem:[#allocation2 + $0x3f8] sm:$0xff]
    %v485 = vunpack.c.l.b16 %v229
    %v486 = vunpack.c.h.b16 %v229
    %v487 = vunpack.c.l.b16 %v230
    %v488 = vunpack.c.h.b16 %v230
    %v489 = vunpack.c.l.b16 %v231
    %v490 = vunpack.c.h.b16 %v231
    %v491 = vunpack.c.l.b16 %v232
    %v492 = vunpack.c.h.b16 %v232
    %v493 = vunpack.c.l.b16 %v233
    %v494 = vunpack.c.h.b16 %v233
    %v495 = vunpack.c.l.b16 %v234
    %v496 = vunpack.c.h.b16 %v234
    %v497 = vunpack.c.l.b16 %v235
    %v498 = vunpack.c.h.b16 %v235
    %v499 = vunpack.c.l.b16 %v236
    %v500 = vunpack.c.h.b16 %v236
    %v501 = vunpack.c.l.b16 %v237
    %v502 = vunpack.c.h.b16 %v237
    %v503 = vunpack.c.l.b16 %v238
    %v504 = vunpack.c.h.b16 %v238
    %v505 = vunpack.c.l.b16 %v239
    %v506 = vunpack.c.h.b16 %v239
    %v507 = vunpack.c.l.b16 %v240
    %v508 = vunpack.c.h.b16 %v240
    %v509 = vunpack.c.l.b16 %v241
    %v510 = vunpack.c.h.b16 %v241
    %v511 = vunpack.c.l.b16 %v242
    %v512 = vunpack.c.h.b16 %v242
    %v513 = vunpack.c.l.b16 %v243
    %v514 = vunpack.c.h.b16 %v243
    %v515 = vunpack.c.l.b16 %v244
    %v516 = vunpack.c.h.b16 %v244
    %v517 = vunpack.c.l.b16 %v245
    %v518 = vunpack.c.h.b16 %v245
    %v519 = vunpack.c.l.b16 %v246
    %v520 = vunpack.c.h.b16 %v246
    %v521 = vunpack.c.l.b16 %v247
    %v522 = vunpack.c.h.b16 %v247
    %v523 = vunpack.c.l.b16 %v248
    %v524 = vunpack.c.h.b16 %v248
    %v525 = vunpack.c.l.b16 %v249
    %v526 = vunpack.c.h.b16 %v249
    %v527 = vunpack.c.l.b16 %v250
    %v528 = vunpack.c.h.b16 %v250
    %v529 = vunpack.c.l.b16 %v251
    %v530 = vunpack.c.h.b16 %v251
    %v531 = vunpack.c.l.b16 %v252
    %v532 = vunpack.c.h.b16 %v252
    %v533 = vunpack.c.l.b16 %v253
    %v534 = vunpack.c.h.b16 %v253
    %v535 = vunpack.c.l.b16 %v254
    %v536 = vunpack.c.h.b16 %v254
    %v537 = vunpack.c.l.b16 %v255
    %v538 = vunpack.c.h.b16 %v255
    %v539 = vunpack.c.l.b16 %v256
    %v540 = vunpack.c.h.b16 %v256
    %v541 = vunpack.c.l.b16 %v257
    %v542 = vunpack.c.h.b16 %v257
    %v543 = vunpack.c.l.b16 %v258
    %v544 = vunpack.c.h.b16 %v258
    %v545 = vunpack.c.l.b16 %v259
    %v546 = vunpack.c.h.b16 %v259
    %v547 = vunpack.c.l.b16 %v260
    %v548 = vunpack.c.h.b16 %v260
    %v549 = vunpack.c.l.b16 %v261
    %v550 = vunpack.c.h.b16 %v261
    %v551 = vunpack.c.l.b16 %v262
    %v552 = vunpack.c.h.b16 %v262
    %v553 = vunpack.c.l.b16 %v263
    %v554 = vunpack.c.h.b16 %v263
    %v555 = vunpack.c.l.b16 %v264
    %v556 = vunpack.c.h.b16 %v264
    %v557 = vunpack.c.l.b16 %v265
    %v558 = vunpack.c.h.b16 %v265
    %v559 = vunpack.c.l.b16 %v266
    %v560 = vunpack.c.h.b16 %v266
    %v561 = vunpack.c.l.b16 %v267
    %v562 = vunpack.c.h.b16 %v267
    %v563 = vunpack.c.l.b16 %v268
    %v564 = vunpack.c.h.b16 %v268
    %v565 = vunpack.c.l.b16 %v269
    %v566 = vunpack.c.h.b16 %v269
    %v567 = vunpack.c.l.b16 %v270
    %v568 = vunpack.c.h.b16 %v270
    %v569 = vunpack.c.l.b16 %v271
    %v570 = vunpack.c.h.b16 %v271
    %v571 = vunpack.c.l.b16 %v272
    %v572 = vunpack.c.h.b16 %v272
    %v573 = vunpack.c.l.b16 %v273
    %v574 = vunpack.c.h.b16 %v273
    %v575 = vunpack.c.l.b16 %v274
    %v576 = vunpack.c.h.b16 %v274
    %v577 = vunpack.c.l.b16 %v275
    %v578 = vunpack.c.h.b16 %v275
    %v579 = vunpack.c.l.b16 %v276
    %v580 = vunpack.c.h.b16 %v276
    %v581 = vunpack.c.l.b16 %v277
    %v582 = vunpack.c.h.b16 %v277
    %v583 = vunpack.c.l.b16 %v278
    %v584 = vunpack.c.h.b16 %v278
    %v585 = vunpack.c.l.b16 %v279
    %v586 = vunpack.c.h.b16 %v279
    %v587 = vunpack.c.l.b16 %v280
    %v588 = vunpack.c.h.b16 %v280
    %v589 = vunpack.c.l.b16 %v281
    %v590 = vunpack.c.h.b16 %v281
    %v591 = vunpack.c.l.b16 %v282
    %v592 = vunpack.c.h.b16 %v282
    %v593 = vunpack.c.l.b16 %v283
    %v594 = vunpack.c.h.b16 %v283
    %v595 = vunpack.c.l.b16 %v284
    %v596 = vunpack.c.h.b16 %v284
    %v597 = vunpack.c.l.b16 %v285
    %v598 = vunpack.c.h.b16 %v285
    %v599 = vunpack.c.l.b16 %v286
    %v600 = vunpack.c.h.b16 %v286
    %v601 = vunpack.c.l.b16 %v287
    %v602 = vunpack.c.h.b16 %v287
    %v603 = vunpack.c.l.b16 %v288
    %v604 = vunpack.c.h.b16 %v288
    %v605 = vunpack.c.l.b16 %v289
    %v606 = vunpack.c.h.b16 %v289
    %v607 = vunpack.c.l.b16 %v290
    %v608 = vunpack.c.h.b16 %v290
    %v609 = vunpack.c.l.b16 %v291
    %v610 = vunpack.c.h.b16 %v291
    %v611 = vunpack.c.l.b16 %v292
    %v612 = vunpack.c.h.b16 %v292
    %v613 = vunpack.c.l.b16 %v293
    %v614 = vunpack.c.h.b16 %v293
    %v615 = vunpack.c.l.b16 %v294
    %v616 = vunpack.c.h.b16 %v294
    %v617 = vunpack.c.l.b16 %v295
    %v618 = vunpack.c.h.b16 %v295
    %v619 = vunpack.c.l.b16 %v296
    %v620 = vunpack.c.h.b16 %v296
    %v621 = vunpack.c.l.b16 %v297
    %v622 = vunpack.c.h.b16 %v297
    %v623 = vunpack.c.l.b16 %v298
    %v624 = vunpack.c.h.b16 %v298
    %v625 = vunpack.c.l.b16 %v299
    %v626 = vunpack.c.h.b16 %v299
    %v627 = vunpack.c.l.b16 %v300
    %v628 = vunpack.c.h.b16 %v300
    %v629 = vunpack.c.l.b16 %v301
    %v630 = vunpack.c.h.b16 %v301
    %v631 = vunpack.c.l.b16 %v302
    %v632 = vunpack.c.h.b16 %v302
    %v633 = vunpack.c.l.b16 %v303
    %v634 = vunpack.c.h.b16 %v303
    %v635 = vunpack.c.l.b16 %v304
    %v636 = vunpack.c.h.b16 %v304
    %v637 = vunpack.c.l.b16 %v305
    %v638 = vunpack.c.h.b16 %v305
    %v639 = vunpack.c.l.b16 %v306
    %v640 = vunpack.c.h.b16 %v306
    %v641 = vunpack.c.l.b16 %v307
    %v642 = vunpack.c.h.b16 %v307
    %v643 = vunpack.c.l.b16 %v308
    %v644 = vunpack.c.h.b16 %v308
    %v645 = vunpack.c.l.b16 %v309
    %v646 = vunpack.c.h.b16 %v309
    %v647 = vunpack.c.l.b16 %v310
    %v648 = vunpack.c.h.b16 %v310
    %v649 = vunpack.c.l.b16 %v311
    %v650 = vunpack.c.h.b16 %v311
    %v651 = vunpack.c.l.b16 %v312
    %v652 = vunpack.c.h.b16 %v312
    %v653 = vunpack.c.l.b16 %v313
    %v654 = vunpack.c.h.b16 %v313
    %v655 = vunpack.c.l.b16 %v314
    %v656 = vunpack.c.h.b16 %v314
    %v657 = vunpack.c.l.b16 %v315
    %v658 = vunpack.c.h.b16 %v315
    %v659 = vunpack.c.l.b16 %v316
    %v660 = vunpack.c.h.b16 %v316
    %v661 = vunpack.c.l.b16 %v317
    %v662 = vunpack.c.h.b16 %v317
    %v663 = vunpack.c.l.b16 %v318
    %v664 = vunpack.c.h.b16 %v318
    %v665 = vunpack.c.l.b16 %v319
    %v666 = vunpack.c.h.b16 %v319
    %v667 = vunpack.c.l.b16 %v320
    %v668 = vunpack.c.h.b16 %v320
    %v669 = vunpack.c.l.b16 %v321
    %v670 = vunpack.c.h.b16 %v321
    %v671 = vunpack.c.l.b16 %v322
    %v672 = vunpack.c.h.b16 %v322
    %v673 = vunpack.c.l.b16 %v323
    %v674 = vunpack.c.h.b16 %v323
    %v675 = vunpack.c.l.b16 %v324
    %v676 = vunpack.c.h.b16 %v324
    %v677 = vunpack.c.l.b16 %v325
    %v678 = vunpack.c.h.b16 %v325
    %v679 = vunpack.c.l.b16 %v326
    %v680 = vunpack.c.h.b16 %v326
    %v681 = vunpack.c.l.b16 %v327
    %v682 = vunpack.c.h.b16 %v327
    %v683 = vunpack.c.l.b16 %v328
    %v684 = vunpack.c.h.b16 %v328
    %v685 = vunpack.c.l.b16 %v329
    %v686 = vunpack.c.h.b16 %v329
    %v687 = vunpack.c.l.b16 %v330
    %v688 = vunpack.c.h.b16 %v330
    %v689 = vunpack.c.l.b16 %v331
    %v690 = vunpack.c.h.b16 %v331
    %v691 = vunpack.c.l.b16 %v332
    %v692 = vunpack.c.h.b16 %v332
    %v693 = vunpack.c.l.b16 %v333
    %v694 = vunpack.c.h.b16 %v333
    %v695 = vunpack.c.l.b16 %v334
    %v696 = vunpack.c.h.b16 %v334
    %v697 = vunpack.c.l.b16 %v335
    %v698 = vunpack.c.h.b16 %v335
    %v699 = vunpack.c.l.b16 %v336
    %v700 = vunpack.c.h.b16 %v336
    %v701 = vunpack.c.l.b16 %v337
    %v702 = vunpack.c.h.b16 %v337
    %v703 = vunpack.c.l.b16 %v338
    %v704 = vunpack.c.h.b16 %v338
    %v705 = vunpack.c.l.b16 %v339
    %v706 = vunpack.c.h.b16 %v339
    %v707 = vunpack.c.l.b16 %v340
    %v708 = vunpack.c.h.b16 %v340
    %v709 = vunpack.c.l.b16 %v341
    %v710 = vunpack.c.h.b16 %v341
    %v711 = vunpack.c.l.b16 %v342
    %v712 = vunpack.c.h.b16 %v342
    %v713 = vunpack.c.l.b16 %v343
    %v714 = vunpack.c.h.b16 %v343
    %v715 = vunpack.c.l.b16 %v344
    %v716 = vunpack.c.h.b16 %v344
    %v717 = vunpack.c.l.b16 %v345
    %v718 = vunpack.c.h.b16 %v345
    %v719 = vunpack.c.l.b16 %v346
    %v720 = vunpack.c.h.b16 %v346
    %v721 = vunpack.c.l.b16 %v347
    %v722 = vunpack.c.h.b16 %v347
    %v723 = vunpack.c.l.b16 %v348
    %v724 = vunpack.c.h.b16 %v348
    %v725 = vunpack.c.l.b16 %v349
    %v726 = vunpack.c.h.b16 %v349
    %v727 = vunpack.c.l.b16 %v350
    %v728 = vunpack.c.h.b16 %v350
    %v729 = vunpack.c.l.b16 %v351
    %v730 = vunpack.c.h.b16 %v351
    %v731 = vunpack.c.l.b16 %v352
    %v732 = vunpack.c.h.b16 %v352
    %v733 = vunpack.c.l.b16 %v353
    %v734 = vunpack.c.h.b16 %v353
    %v735 = vunpack.c.l.b16 %v354
    %v736 = vunpack.c.h.b16 %v354
    %v737 = vunpack.c.l.b16 %v355
    %v738 = vunpack.c.h.b16 %v355
    %v739 = vunpack.c.l.b16 %v356
    %v740 = vunpack.c.h.b16 %v356
    %v741 = vpack.c.b16 %v489, %v485
    %v742 = vpack.c.b16 %v490, %v486
    %v743 = vpack.c.b16 %v491, %v487
    %v744 = vpack.c.b16 %v492, %v488
    %v745 = vpack.c.b16 %v497, %v493
    %v746 = vpack.c.b16 %v498, %v494
    %v747 = vpack.c.b16 %v499, %v495
    %v748 = vpack.c.b16 %v500, %v496
    %v749 = vpack.c.b16 %v505, %v501
    %v750 = vpack.c.b16 %v506, %v502
    %v751 = vpack.c.b16 %v507, %v503
    %v752 = vpack.c.b16 %v508, %v504
    %v753 = vpack.c.b16 %v513, %v509
    %v754 = vpack.c.b16 %v514, %v510
    %v755 = vpack.c.b16 %v515, %v511
    %v756 = vpack.c.b16 %v516, %v512
    %v757 = vpack.c.b16 %v521, %v517
    %v758 = vpack.c.b16 %v522, %v518
    %v759 = vpack.c.b16 %v523, %v519
    %v760 = vpack.c.b16 %v524, %v520
    %v761 = vpack.c.b16 %v529, %v525
    %v762 = vpack.c.b16 %v530, %v526
    %v763 = vpack.c.b16 %v531, %v527
    %v764 = vpack.c.b16 %v532, %v528
    %v765 = vpack.c.b16 %v537, %v533
    %v766 = vpack.c.b16 %v538, %v534
    %v767 = vpack.c.b16 %v539, %v535
    %v768 = vpack.c.b16 %v540, %v536
    %v769 = vpack.c.b16 %v545, %v541
    %v770 = vpack.c.b16 %v546, %v542
    %v771 = vpack.c.b16 %v547, %v543
    %v772 = vpack.c.b16 %v548, %v544
    %v773 = vpack.c.b16 %v553, %v549
    %v774 = vpack.c.b16 %v554, %v550
    %v775 = vpack.c.b16 %v555, %v551
    %v776 = vpack.c.b16 %v556, %v552
    %v777 = vpack.c.b16 %v561, %v557
    %v778 = vpack.c.b16 %v562, %v558
    %v779 = vpack.c.b16 %v563, %v559
    %v780 = vpack.c.b16 %v564, %v560
    %v781 = vpack.c.b16 %v569, %v565
    %v782 = vpack.c.b16 %v570, %v566
    %v783 = vpack.c.b16 %v571, %v567
    %v784 = vpack.c.b16 %v572, %v568
    %v785 = vpack.c.b16 %v577, %v573
    %v786 = vpack.c.b16 %v578, %v574
    %v787 = vpack.c.b16 %v579, %v575
    %v788 = vpack.c.b16 %v580, %v576
    %v789 = vpack.c.b16 %v585, %v581
    %v790 = vpack.c.b16 %v586, %v582
    %v791 = vpack.c.b16 %v587, %v583
    %v792 = vpack.c.b16 %v588, %v584
    %v793 = vpack.c.b16 %v593, %v589
    %v794 = vpack.c.b16 %v594, %v590
    %v795 = vpack.c.b16 %v595, %v591
    %v796 = vpack.c.b16 %v596, %v592
    %v797 = vpack.c.b16 %v601, %v597
    %v798 = vpack.c.b16 %v602, %v598
    %v799 = vpack.c.b16 %v603, %v599
    %v800 = vpack.c.b16 %v604, %v600
    %v801 = vpack.c.b16 %v609, %v605
    %v802 = vpack.c.b16 %v610, %v606
    %v803 = vpack.c.b16 %v611, %v607
    %v804 = vpack.c.b16 %v612, %v608
    %v805 = vpack.c.b16 %v617, %v613
    %v806 = vpack.c.b16 %v618, %v614
    %v807 = vpack.c.b16 %v619, %v615
    %v808 = vpack.c.b16 %v620, %v616
    %v809 = vpack.c.b16 %v625, %v621
    %v810 = vpack.c.b16 %v626, %v622
    %v811 = vpack.c.b16 %v627, %v623
    %v812 = vpack.c.b16 %v628, %v624
    %v813 = vpack.c.b16 %v633, %v629
    %v814 = vpack.c.b16 %v634, %v630
    %v815 = vpack.c.b16 %v635, %v631
    %v816 = vpack.c.b16 %v636, %v632
    %v817 = vpack.c.b16 %v641, %v637
    %v818 = vpack.c.b16 %v642, %v638
    %v819 = vpack.c.b16 %v643, %v639
    %v820 = vpack.c.b16 %v644, %v640
    %v821 = vpack.c.b16 %v649, %v645
    %v822 = vpack.c.b16 %v650, %v646
    %v823 = vpack.c.b16 %v651, %v647
    %v824 = vpack.c.b16 %v652, %v648
    %v825 = vpack.c.b16 %v657, %v653
    %v826 = vpack.c.b16 %v658, %v654
    %v827 = vpack.c.b16 %v659, %v655
    %v828 = vpack.c.b16 %v660, %v656
    %v829 = vpack.c.b16 %v665, %v661
    %v830 = vpack.c.b16 %v666, %v662
    %v831 = vpack.c.b16 %v667, %v663
    %v832 = vpack.c.b16 %v668, %v664
    %v833 = vpack.c.b16 %v673, %v669
    %v834 = vpack.c.b16 %v674, %v670
    %v835 = vpack.c.b16 %v675, %v671
    %v836 = vpack.c.b16 %v676, %v672
    %v837 = vpack.c.b16 %v681, %v677
    %v838 = vpack.c.b16 %v682, %v678
    %v839 = vpack.c.b16 %v683, %v679
    %v840 = vpack.c.b16 %v684, %v680
    %v841 = vpack.c.b16 %v689, %v685
    %v842 = vpack.c.b16 %v690, %v686
    %v843 = vpack.c.b16 %v691, %v687
    %v844 = vpack.c.b16 %v692, %v688
    %v845 = vpack.c.b16 %v697, %v693
    %v846 = vpack.c.b16 %v698, %v694
    %v847 = vpack.c.b16 %v699, %v695
    %v848 = vpack.c.b16 %v700, %v696
    %v849 = vpack.c.b16 %v705, %v701
    %v850 = vpack.c.b16 %v706, %v702
    %v851 = vpack.c.b16 %v707, %v703
    %v852 = vpack.c.b16 %v708, %v704
    %v853 = vpack.c.b16 %v713, %v709
    %v854 = vpack.c.b16 %v714, %v710
    %v855 = vpack.c.b16 %v715, %v711
    %v856 = vpack.c.b16 %v716, %v712
    %v857 = vpack.c.b16 %v721, %v717
    %v858 = vpack.c.b16 %v722, %v718
    %v859 = vpack.c.b16 %v723, %v719
    %v860 = vpack.c.b16 %v724, %v720
    %v861 = vpack.c.b16 %v729, %v725
    %v862 = vpack.c.b16 %v730, %v726
    %v863 = vpack.c.b16 %v731, %v727
    %v864 = vpack.c.b16 %v732, %v728
    %v865 = vpack.c.b16 %v737, %v733
    %v866 = vpack.c.b16 %v738, %v734
    %v867 = vpack.c.b16 %v739, %v735
    %v868 = vpack.c.b16 %v740, %v736
    %997 = vmatprep.subr.bf16.mxu0 %v770
    %998 = vmatpush1.bf16.msra.mxu0 %v769
    %999 = vmatprep.subr.bf16.mxu0 %v766
    %1000 = vmatpush1.bf16.msra.mxu0 %v765
    %1001 = vmatprep.subr.bf16.mxu0 %v762
    %1002 = vmatpush1.bf16.msra.mxu0 %v761
    %1003 = vmatprep.subr.bf16.mxu0 %v758
    %1004 = vmatpush1.bf16.msra.mxu0 %v757
    %1005 = vmatprep.subr.bf16.mxu0 %v754
    %1006 = vmatpush1.bf16.msra.mxu0 %v753
    %1007 = vmatprep.subr.bf16.mxu0 %v750
    %1008 = vmatpush1.bf16.msra.mxu0 %v749
    %1009 = vmatprep.subr.bf16.mxu0 %v746
    %1010 = vmatpush1.bf16.msra.mxu0 %v745
    %1011 = vmatprep.subr.bf16.mxu0 %v742
    %1012 = vmatpush1.bf16.msra.mxu0 %v741
    %1013 = vmatprep.subr.bf16.mxu0 %v802
    %1014 = vmatpush2.bf16.msra.mxu0 %v801
    %1015 = vmatprep.subr.bf16.mxu0 %v798
    %1016 = vmatpush2.bf16.msra.mxu0 %v797
    %1017 = vmatprep.subr.bf16.mxu0 %v794
    %1018 = vmatpush2.bf16.msra.mxu0 %v793
    %1019 = vmatprep.subr.bf16.mxu0 %v790
    %1020 = vmatpush2.bf16.msra.mxu0 %v789
    %1021 = vmatprep.subr.bf16.mxu0 %v786
    %1022 = vmatpush2.bf16.msra.mxu0 %v785
    %1023 = vmatprep.subr.bf16.mxu0 %v782
    %1024 = vmatpush2.bf16.msra.mxu0 %v781
    %1025 = vmatprep.subr.bf16.mxu0 %v778
    %1026 = vmatpush2.bf16.msra.mxu0 %v777
    %1027 = vmatprep.subr.bf16.mxu0 %v774
    %1028 = vmatpush2.bf16.msra.mxu0 %v773
    %1029 = vmatprep.mubr.bf16.mxu0 %v226
    %1030 = vmatmul.mubr.bf16.gmra.mxu0 %v225
    %v1031 = vpop.f32.mrf.mxu0
    %v1032 = vadd.f32 0.0, %v1031
    %v1033 = vpop.f32.mrf.mxu0
    %v1034 = vadd.f32 0.0, %v1033
    %v1035 = vpop.f32.mrf.mxu0
    %v1036 = vpop.f32.mrf.mxu0
    %1037 = vdwg.mxu0
    %1038 = vmatprep.subr.bf16.mxu0 %v834
    %1039 = vmatpush1.bf16.msra.mxu0 %v833
    %1040 = vmatprep.subr.bf16.mxu0 %v830
    %1041 = vmatpush1.bf16.msra.mxu0 %v829
    %1042 = vmatprep.subr.bf16.mxu0 %v826
    %1043 = vmatpush1.bf16.msra.mxu0 %v825
    %1044 = vmatprep.subr.bf16.mxu0 %v822
    %1045 = vmatpush1.bf16.msra.mxu0 %v821
    %1046 = vmatprep.subr.bf16.mxu0 %v818
    %1047 = vmatpush1.bf16.msra.mxu0 %v817
    %1048 = vmatprep.subr.bf16.mxu0 %v814
    %1049 = vmatpush1.bf16.msra.mxu0 %v813
    %1050 = vmatprep.subr.bf16.mxu0 %v810
    %1051 = vmatpush1.bf16.msra.mxu0 %v809
    %1052 = vmatprep.subr.bf16.mxu0 %v806
    %1053 = vmatpush1.bf16.msra.mxu0 %v805
    %1054 = vmatprep.subr.bf16.mxu0 %v866
    %1055 = vmatpush2.bf16.msra.mxu0 %v865
    %1056 = vmatprep.subr.bf16.mxu0 %v862
    %1057 = vmatpush2.bf16.msra.mxu0 %v861
    %1058 = vmatprep.subr.bf16.mxu0 %v858
    %1059 = vmatpush2.bf16.msra.mxu0 %v857
    %1060 = vmatprep.subr.bf16.mxu0 %v854
    %1061 = vmatpush2.bf16.msra.mxu0 %v853
    %1062 = vmatprep.subr.bf16.mxu0 %v850
    %1063 = vmatpush2.bf16.msra.mxu0 %v849
    %1064 = vmatprep.subr.bf16.mxu0 %v846
    %1065 = vmatpush2.bf16.msra.mxu0 %v845
    %1066 = vmatprep.subr.bf16.mxu0 %v842
    %1067 = vmatpush2.bf16.msra.mxu0 %v841
    %1068 = vmatprep.subr.bf16.mxu0 %v838
    %1069 = vmatpush2.bf16.msra.mxu0 %v837
    %1070 = vmatprep.mubr.bf16.mxu0 %v228
    %1071 = vmatmul.mubr.bf16.gmra.mxu0 %v227
    %v1072 = vpop.f32.mrf.mxu0
    %v1073 = vadd.f32 %v1032, %v1072
    %v1074 = vpop.f32.mrf.mxu0
    %v1075 = vadd.f32 %v1034, %v1074
    %v1076 = vpop.f32.mrf.mxu0
    %v1077 = vpop.f32.mrf.mxu0
    %1078 = vdwg.mxu0
    %1079 = vmatprep.subr.bf16.mxu0 %v772
    %1080 = vmatpush1.bf16.msra.mxu0 %v771
    %1081 = vmatprep.subr.bf16.mxu0 %v768
    %1082 = vmatpush1.bf16.msra.mxu0 %v767
    %1083 = vmatprep.subr.bf16.mxu0 %v764
    %1084 = vmatpush1.bf16.msra.mxu0 %v763
    %1085 = vmatprep.subr.bf16.mxu0 %v760
    %1086 = vmatpush1.bf16.msra.mxu0 %v759
    %1087 = vmatprep.subr.bf16.mxu0 %v756
    %1088 = vmatpush1.bf16.msra.mxu0 %v755
    %1089 = vmatprep.subr.bf16.mxu0 %v752
    %1090 = vmatpush1.bf16.msra.mxu0 %v751
    %1091 = vmatprep.subr.bf16.mxu0 %v748
    %1092 = vmatpush1.bf16.msra.mxu0 %v747
    %1093 = vmatprep.subr.bf16.mxu0 %v744
    %1094 = vmatpush1.bf16.msra.mxu0 %v743
    %1095 = vmatprep.subr.bf16.mxu0 %v804
    %1096 = vmatpush2.bf16.msra.mxu0 %v803
    %1097 = vmatprep.subr.bf16.mxu0 %v800
    %1098 = vmatpush2.bf16.msra.mxu0 %v799
    %1099 = vmatprep.subr.bf16.mxu0 %v796
    %1100 = vmatpush2.bf16.msra.mxu0 %v795
    %1101 = vmatprep.subr.bf16.mxu0 %v792
    %1102 = vmatpush2.bf16.msra.mxu0 %v791
    %1103 = vmatprep.subr.bf16.mxu0 %v788
    %1104 = vmatpush2.bf16.msra.mxu0 %v787
    %1105 = vmatprep.subr.bf16.mxu0 %v784
    %1106 = vmatpush2.bf16.msra.mxu0 %v783
    %1107 = vmatprep.subr.bf16.mxu0 %v780
    %1108 = vmatpush2.bf16.msra.mxu0 %v779
    %1109 = vmatprep.subr.bf16.mxu0 %v776
    %1110 = vmatpush2.bf16.msra.mxu0 %v775
    %1111 = vmatprep.mubr.bf16.mxu0 %v226
    %1112 = vmatmul.mubr.bf16.gmra.mxu0 %v225
    %v1113 = vpop.f32.mrf.mxu0
    %v1114 = vadd.f32 0.0, %v1113
    %v1115 = vpop.f32.mrf.mxu0
    %v1116 = vadd.f32 0.0, %v1115
    %v1117 = vpop.f32.mrf.mxu0
    %v1118 = vpop.f32.mrf.mxu0
    %1119 = vdwg.mxu0
    %1120 = vmatprep.subr.bf16.mxu0 %v836
    %1121 = vmatpush1.bf16.msra.mxu0 %v835
    %1122 = vmatprep.subr.bf16.mxu0 %v832
    %1123 = vmatpush1.bf16.msra.mxu0 %v831
    %1124 = vmatprep.subr.bf16.mxu0 %v828
    %1125 = vmatpush1.bf16.msra.mxu0 %v827
    %1126 = vmatprep.subr.bf16.mxu0 %v824
    %1127 = vmatpush1.bf16.msra.mxu0 %v823
    %1128 = vmatprep.subr.bf16.mxu0 %v820
    %1129 = vmatpush1.bf16.msra.mxu0 %v819
    %1130 = vmatprep.subr.bf16.mxu0 %v816
    %1131 = vmatpush1.bf16.msra.mxu0 %v815
    %1132 = vmatprep.subr.bf16.mxu0 %v812
    %1133 = vmatpush1.bf16.msra.mxu0 %v811
    %1134 = vmatprep.subr.bf16.mxu0 %v808
    %1135 = vmatpush1.bf16.msra.mxu0 %v807
    %1136 = vmatprep.subr.bf16.mxu0 %v868
    %1137 = vmatpush2.bf16.msra.mxu0 %v867
    %1138 = vmatprep.subr.bf16.mxu0 %v864
    %1139 = vmatpush2.bf16.msra.mxu0 %v863
    %1140 = vmatprep.subr.bf16.mxu0 %v860
    %1141 = vmatpush2.bf16.msra.mxu0 %v859
    %1142 = vmatprep.subr.bf16.mxu0 %v856
    %1143 = vmatpush2.bf16.msra.mxu0 %v855
    %1144 = vmatprep.subr.bf16.mxu0 %v852
    %1145 = vmatpush2.bf16.msra.mxu0 %v851
    %1146 = vmatprep.subr.bf16.mxu0 %v848
    %1147 = vmatpush2.bf16.msra.mxu0 %v847
    %1148 = vmatprep.subr.bf16.mxu0 %v844
    %1149 = vmatpush2.bf16.msra.mxu0 %v843
    %1150 = vmatprep.subr.bf16.mxu0 %v840
    %1151 = vmatpush2.bf16.msra.mxu0 %v839
    %1152 = vmatprep.mubr.bf16.mxu0 %v228
    %1153 = vmatmul.mubr.bf16.gmra.mxu0 %v227
    %v1154 = vpop.f32.mrf.mxu0
    %v1155 = vadd.f32 %v1114, %v1154
    %v1156 = vpop.f32.mrf.mxu0
    %v1157 = vadd.f32 %v1116, %v1156
    %v1158 = vpop.f32.mrf.mxu0
    %v1159 = vpop.f32.mrf.mxu0
    %1160 = vdwg.mxu0
    %v1161 = vld [vmem:[%s4] sm:$0xf]
    %v1162 = vld [vmem:[%s5] sm:$0xf]
    %vm1163 = vcmask 1041408
    %v1164 = vsel %vm1163, %v1073, 0.0
    %v1165 = vrot.slane %v1164, 4
    %v1166 = vadd.f32 %v1164, %v1165
    %v1167 = vrot.slane %v1166, 2
    %v1168 = vadd.f32 %v1166, %v1167
    %v1169 = vrot.slane %v1168, 1
    %v1170 = vadd.f32 %v1168, %v1169
    %v1171 = vsel %vm1163, %v1075, 0.0
    %v1172 = vrot.slane %v1171, 4
    %v1173 = vadd.f32 %v1171, %v1172
    %v1174 = vrot.slane %v1173, 2
    %v1175 = vadd.f32 %v1173, %v1174
    %v1176 = vrot.slane %v1175, 1
    %v1177 = vadd.f32 %v1175, %v1176
    %v1178 = vsel %vm1163, %v1155, 0.0
    %v1179 = vrot.slane %v1178, 4
    %v1180 = vadd.f32 %v1178, %v1179
    %v1181 = vrot.slane %v1180, 2
    %v1182 = vadd.f32 %v1180, %v1181
    %v1183 = vrot.slane %v1182, 1
    %v1184 = vadd.f32 %v1182, %v1183
    %v1185 = vsel %vm1163, %v1157, 0.0
    %v1186 = vrot.slane %v1185, 4
    %v1187 = vadd.f32 %v1185, %v1186
    %v1188 = vrot.slane %v1187, 2
    %v1189 = vadd.f32 %v1187, %v1188
    %v1190 = vrot.slane %v1189, 1
    %v1191 = vadd.f32 %v1189, %v1190
    %v1192 = vadd.f32 %v1170, %v1191
    %v1193 = vadd.f32 %v1177, %v1170
    %v1194 = vadd.f32 %v1184, %v1177
    %v1195 = vadd.f32 %v1191, %v1184
    %v1196 = vadd.f32 %v1192, %v1194
    %v1197 = vadd.f32 %v1193, %v1195
    %v1198 = vrcp.pop 8.0
    %v1199 = vmul.f32 %v1196, %v1198
    %v1200 = vmul.f32 %v1197, %v1198
    %v1201 = vlaneseq
    %v1202 = vshrl.u32 %v1201, 7
    %v1203 = vsub.s32 0, %v1202
    %v1204 = vrot.slane %v1199, %v1203
    %v1205 = vlaneseq
    %v1206 = vshrl.u32 %v1205, 7
    %v1207 = vsub.s32 0, %v1206
    %v1208 = vrot.slane %v1200, %v1207
    %v1209 = vsub.f32 %v1073, %v1204
    %v1210 = vsub.f32 %v1075, %v1208
    %v1211 = vsub.f32 %v1155, %v1204
    %v1212 = vsub.f32 %v1157, %v1208
    %v1213 = vmul.f32 %v1209, %v1209
    %v1214 = vmul.f32 %v1210, %v1210
    %v1215 = vmul.f32 %v1211, %v1211
    %v1216 = vmul.f32 %v1212, %v1212
    %v1217 = vsel %vm1163, %v1213, 0.0
    %v1218 = vrot.slane %v1217, 4
    %v1219 = vadd.f32 %v1217, %v1218
    %v1220 = vrot.slane %v1219, 2
    %v1221 = vadd.f32 %v1219, %v1220
    %v1222 = vrot.slane %v1221, 1
    %v1223 = vadd.f32 %v1221, %v1222
    %v1224 = vsel %vm1163, %v1214, 0.0
    %v1225 = vrot.slane %v1224, 4
    %v1226 = vadd.f32 %v1224, %v1225
    %v1227 = vrot.slane %v1226, 2
    %v1228 = vadd.f32 %v1226, %v1227
    %v1229 = vrot.slane %v1228, 1
    %v1230 = vadd.f32 %v1228, %v1229
    %v1231 = vsel %vm1163, %v1215, 0.0
    %v1232 = vrot.slane %v1231, 4
    %v1233 = vadd.f32 %v1231, %v1232
    %v1234 = vrot.slane %v1233, 2
    %v1235 = vadd.f32 %v1233, %v1234
    %v1236 = vrot.slane %v1235, 1
    %v1237 = vadd.f32 %v1235, %v1236
    %v1238 = vsel %vm1163, %v1216, 0.0
    %v1239 = vrot.slane %v1238, 4
    %v1240 = vadd.f32 %v1238, %v1239
    %v1241 = vrot.slane %v1240, 2
    %v1242 = vadd.f32 %v1240, %v1241
    %v1243 = vrot.slane %v1242, 1
    %v1244 = vadd.f32 %v1242, %v1243
    %v1245 = vadd.f32 %v1223, %v1244
    %v1246 = vadd.f32 %v1230, %v1223
    %v1247 = vadd.f32 %v1237, %v1230
    %v1248 = vadd.f32 %v1244, %v1237
    %v1249 = vadd.f32 %v1245, %v1247
    %v1250 = vadd.f32 %v1246, %v1248
    %v1251 = vmul.f32 %v1249, %v1198
    %v1252 = vmul.f32 %v1250, %v1198
    %v1253 = vadd.f32 %v1251, 1e-05
    %v1254 = vadd.f32 %v1252, 1e-05
    %v1255 = vrsqrt.pop %v1253
    %v1256 = vrsqrt.pop %v1254
    %v1257 = vlaneseq
    %v1258 = vshrl.u32 %v1257, 7
    %v1259 = vsub.s32 0, %v1258
    %v1260 = vrot.slane %v1255, %v1259
    %v1261 = vlaneseq
    %v1262 = vshrl.u32 %v1261, 7
    %v1263 = vsub.s32 0, %v1262
    %v1264 = vrot.slane %v1256, %v1263
    %v1265 = vmul.f32 %v1209, %v1260
    %v1266 = vmul.f32 %v1210, %v1264
    %v1267 = vmul.f32 %v1211, %v1260
    %v1268 = vmul.f32 %v1212, %v1264
    %v1270 = vlaneseq
    %v1271 = vshrl.u32 %v1270, 7
    %v1272 = vsub.s32 0, %v1271
    %v1273 = vrot.slane %v1161, %v1272
    %v1274 = vlaneseq
    %v1275 = vshrl.u32 %v1274, 7
    %v1276 = vsub.s32 1, %v1275
    %v1277 = vrot.slane %v1161, %v1276
    %v1278 = vlaneseq
    %v1279 = vshrl.u32 %v1278, 7
    %v1280 = vsub.s32 2, %v1279
    %v1281 = vrot.slane %v1161, %v1280
    %v1282 = vlaneseq
    %v1283 = vshrl.u32 %v1282, 7
    %v1284 = vsub.s32 3, %v1283
    %v1285 = vrot.slane %v1161, %v1284
    %v1290 = vmul.f32 %v1265, %v1273
    %v1291 = vmul.f32 %v1266, %v1277
    %v1292 = vmul.f32 %v1267, %v1281
    %v1293 = vmul.f32 %v1268, %v1285
    %v1295 = vlaneseq
    %v1296 = vshrl.u32 %v1295, 7
    %v1297 = vsub.s32 0, %v1296
    %v1298 = vrot.slane %v1162, %v1297
    %v1299 = vlaneseq
    %v1300 = vshrl.u32 %v1299, 7
    %v1301 = vsub.s32 1, %v1300
    %v1302 = vrot.slane %v1162, %v1301
    %v1303 = vlaneseq
    %v1304 = vshrl.u32 %v1303, 7
    %v1305 = vsub.s32 2, %v1304
    %v1306 = vrot.slane %v1162, %v1305
    %v1307 = vlaneseq
    %v1308 = vshrl.u32 %v1307, 7
    %v1309 = vsub.s32 3, %v1308
    %v1310 = vrot.slane %v1162, %v1309
    %v1315 = vadd.f32 %v1290, %v1298
    %v1316 = vadd.f32 %v1291, %v1302
    %v1317 = vadd.f32 %v1292, %v1306
    %v1318 = vadd.f32 %v1293, %v1310
    %v1319 = vmax.f32 %v1315, 0.0
    %v1320 = vmax.f32 %v1316, 0.0
    %v1321 = vmax.f32 %v1317, 0.0
    %v1322 = vmax.f32 %v1318, 0.0
    %v1323 = vpack.c.bf16 %v1319, %v1319
    %v1324 = vpack.c.bf16 %v1320, %v1320
    %v1325 = vpack.c.bf16 %v1321, %v1321
    %v1326 = vpack.c.bf16 %v1322, %v1322
    %v1327 = vld [vmem:[#allocation4] sm:$0xff]
    %v1328 = vld [vmem:[#allocation4 + $0x8] sm:$0xff]
    %v1329 = vld [vmem:[#allocation4 + $0x10] sm:$0xff]
    %v1330 = vld [vmem:[#allocation4 + $0x18] sm:$0xff]
    %v1331 = vld [vmem:[#allocation4 + $0x20] sm:$0xff]
    %v1332 = vld [vmem:[#allocation4 + $0x28] sm:$0xff]
    %v1333 = vld [vmem:[#allocation4 + $0x30] sm:$0xff]
    %v1334 = vld [vmem:[#allocation4 + $0x38] sm:$0xff]
    %v1335 = vld [vmem:[#allocation4 + $0x40] sm:$0xff]
    %v1336 = vld [vmem:[#allocation4 + $0x48] sm:$0xff]
    %v1337 = vld [vmem:[#allocation4 + $0x50] sm:$0xff]
    %v1338 = vld [vmem:[#allocation4 + $0x58] sm:$0xff]
    %v1339 = vld [vmem:[#allocation4 + $0x60] sm:$0xff]
    %v1340 = vld [vmem:[#allocation4 + $0x68] sm:$0xff]
    %v1341 = vld [vmem:[#allocation4 + $0x70] sm:$0xff]
    %v1342 = vld [vmem:[#allocation4 + $0x78] sm:$0xff]
    %v1343 = vld [vmem:[#allocation4 + $0x80] sm:$0xff]
    %v1344 = vld [vmem:[#allocation4 + $0x88] sm:$0xff]
    %v1345 = vld [vmem:[#allocation4 + $0x90] sm:$0xff]
    %v1346 = vld [vmem:[#allocation4 + $0x98] sm:$0xff]
    %v1347 = vld [vmem:[#allocation4 + $0xa0] sm:$0xff]
    %v1348 = vld [vmem:[#allocation4 + $0xa8] sm:$0xff]
    %v1349 = vld [vmem:[#allocation4 + $0xb0] sm:$0xff]
    %v1350 = vld [vmem:[#allocation4 + $0xb8] sm:$0xff]
    %v1351 = vld [vmem:[#allocation4 + $0xc0] sm:$0xff]
    %v1352 = vld [vmem:[#allocation4 + $0xc8] sm:$0xff]
    %v1353 = vld [vmem:[#allocation4 + $0xd0] sm:$0xff]
    %v1354 = vld [vmem:[#allocation4 + $0xd8] sm:$0xff]
    %v1355 = vld [vmem:[#allocation4 + $0xe0] sm:$0xff]
    %v1356 = vld [vmem:[#allocation4 + $0xe8] sm:$0xff]
    %v1357 = vld [vmem:[#allocation4 + $0xf0] sm:$0xff]
    %v1358 = vld [vmem:[#allocation4 + $0xf8] sm:$0xff]
    %v1359 = vld [vmem:[#allocation4 + $0x100] sm:$0xff]
    %v1360 = vld [vmem:[#allocation4 + $0x108] sm:$0xff]
    %v1361 = vld [vmem:[#allocation4 + $0x110] sm:$0xff]
    %v1362 = vld [vmem:[#allocation4 + $0x118] sm:$0xff]
    %v1363 = vld [vmem:[#allocation4 + $0x120] sm:$0xff]
    %v1364 = vld [vmem:[#allocation4 + $0x128] sm:$0xff]
    %v1365 = vld [vmem:[#allocation4 + $0x130] sm:$0xff]
    %v1366 = vld [vmem:[#allocation4 + $0x138] sm:$0xff]
    %v1367 = vld [vmem:[#allocation4 + $0x140] sm:$0xff]
    %v1368 = vld [vmem:[#allocation4 + $0x148] sm:$0xff]
    %v1369 = vld [vmem:[#allocation4 + $0x150] sm:$0xff]
    %v1370 = vld [vmem:[#allocation4 + $0x158] sm:$0xff]
    %v1371 = vld [vmem:[#allocation4 + $0x160] sm:$0xff]
    %v1372 = vld [vmem:[#allocation4 + $0x168] sm:$0xff]
    %v1373 = vld [vmem:[#allocation4 + $0x170] sm:$0xff]
    %v1374 = vld [vmem:[#allocation4 + $0x178] sm:$0xff]
    %v1375 = vld [vmem:[#allocation4 + $0x180] sm:$0xff]
    %v1376 = vld [vmem:[#allocation4 + $0x188] sm:$0xff]
    %v1377 = vld [vmem:[#allocation4 + $0x190] sm:$0xff]
    %v1378 = vld [vmem:[#allocation4 + $0x198] sm:$0xff]
    %v1379 = vld [vmem:[#allocation4 + $0x1a0] sm:$0xff]
    %v1380 = vld [vmem:[#allocation4 + $0x1a8] sm:$0xff]
    %v1381 = vld [vmem:[#allocation4 + $0x1b0] sm:$0xff]
    %v1382 = vld [vmem:[#allocation4 + $0x1b8] sm:$0xff]
    %v1383 = vld [vmem:[#allocation4 + $0x1c0] sm:$0xff]
    %v1384 = vld [vmem:[#allocation4 + $0x1c8] sm:$0xff]
    %v1385 = vld [vmem:[#allocation4 + $0x1d0] sm:$0xff]
    %v1386 = vld [vmem:[#allocation4 + $0x1d8] sm:$0xff]
    %v1387 = vld [vmem:[#allocation4 + $0x1e0] sm:$0xff]
    %v1388 = vld [vmem:[#allocation4 + $0x1e8] sm:$0xff]
    %v1389 = vld [vmem:[#allocation4 + $0x1f0] sm:$0xff]
    %v1390 = vld [vmem:[#allocation4 + $0x1f8] sm:$0xff]
    %v1391 = vld [vmem:[#allocation4 + $0x200] sm:$0xff]
    %v1392 = vld [vmem:[#allocation4 + $0x208] sm:$0xff]
    %v1393 = vld [vmem:[#allocation4 + $0x210] sm:$0xff]
    %v1394 = vld [vmem:[#allocation4 + $0x218] sm:$0xff]
    %v1395 = vld [vmem:[#allocation4 + $0x220] sm:$0xff]
    %v1396 = vld [vmem:[#allocation4 + $0x228] sm:$0xff]
    %v1397 = vld [vmem:[#allocation4 + $0x230] sm:$0xff]
    %v1398 = vld [vmem:[#allocation4 + $0x238] sm:$0xff]
    %v1399 = vld [vmem:[#allocation4 + $0x240] sm:$0xff]
    %v1400 = vld [vmem:[#allocation4 + $0x248] sm:$0xff]
    %v1401 = vld [vmem:[#allocation4 + $0x250] sm:$0xff]
    %v1402 = vld [vmem:[#allocation4 + $0x258] sm:$0xff]
    %v1403 = vld [vmem:[#allocation4 + $0x260] sm:$0xff]
    %v1404 = vld [vmem:[#allocation4 + $0x268] sm:$0xff]
    %v1405 = vld [vmem:[#allocation4 + $0x270] sm:$0xff]
    %v1406 = vld [vmem:[#allocation4 + $0x278] sm:$0xff]
    %v1407 = vld [vmem:[#allocation4 + $0x280] sm:$0xff]
    %v1408 = vld [vmem:[#allocation4 + $0x288] sm:$0xff]
    %v1409 = vld [vmem:[#allocation4 + $0x290] sm:$0xff]
    %v1410 = vld [vmem:[#allocation4 + $0x298] sm:$0xff]
    %v1411 = vld [vmem:[#allocation4 + $0x2a0] sm:$0xff]
    %v1412 = vld [vmem:[#allocation4 + $0x2a8] sm:$0xff]
    %v1413 = vld [vmem:[#allocation4 + $0x2b0] sm:$0xff]
    %v1414 = vld [vmem:[#allocation4 + $0x2b8] sm:$0xff]
    %v1415 = vld [vmem:[#allocation4 + $0x2c0] sm:$0xff]
    %v1416 = vld [vmem:[#allocation4 + $0x2c8] sm:$0xff]
    %v1417 = vld [vmem:[#allocation4 + $0x2d0] sm:$0xff]
    %v1418 = vld [vmem:[#allocation4 + $0x2d8] sm:$0xff]
    %v1419 = vld [vmem:[#allocation4 + $0x2e0] sm:$0xff]
    %v1420 = vld [vmem:[#allocation4 + $0x2e8] sm:$0xff]
    %v1421 = vld [vmem:[#allocation4 + $0x2f0] sm:$0xff]
    %v1422 = vld [vmem:[#allocation4 + $0x2f8] sm:$0xff]
    %v1423 = vld [vmem:[#allocation4 + $0x300] sm:$0xff]
    %v1424 = vld [vmem:[#allocation4 + $0x308] sm:$0xff]
    %v1425 = vld [vmem:[#allocation4 + $0x310] sm:$0xff]
    %v1426 = vld [vmem:[#allocation4 + $0x318] sm:$0xff]
    %v1427 = vld [vmem:[#allocation4 + $0x320] sm:$0xff]
    %v1428 = vld [vmem:[#allocation4 + $0x328] sm:$0xff]
    %v1429 = vld [vmem:[#allocation4 + $0x330] sm:$0xff]
    %v1430 = vld [vmem:[#allocation4 + $0x338] sm:$0xff]
    %v1431 = vld [vmem:[#allocation4 + $0x340] sm:$0xff]
    %v1432 = vld [vmem:[#allocation4 + $0x348] sm:$0xff]
    %v1433 = vld [vmem:[#allocation4 + $0x350] sm:$0xff]
    %v1434 = vld [vmem:[#allocation4 + $0x358] sm:$0xff]
    %v1435 = vld [vmem:[#allocation4 + $0x360] sm:$0xff]
    %v1436 = vld [vmem:[#allocation4 + $0x368] sm:$0xff]
    %v1437 = vld [vmem:[#allocation4 + $0x370] sm:$0xff]
    %v1438 = vld [vmem:[#allocation4 + $0x378] sm:$0xff]
    %v1439 = vld [vmem:[#allocation4 + $0x380] sm:$0xff]
    %v1440 = vld [vmem:[#allocation4 + $0x388] sm:$0xff]
    %v1441 = vld [vmem:[#allocation4 + $0x390] sm:$0xff]
    %v1442 = vld [vmem:[#allocation4 + $0x398] sm:$0xff]
    %v1443 = vld [vmem:[#allocation4 + $0x3a0] sm:$0xff]
    %v1444 = vld [vmem:[#allocation4 + $0x3a8] sm:$0xff]
    %v1445 = vld [vmem:[#allocation4 + $0x3b0] sm:$0xff]
    %v1446 = vld [vmem:[#allocation4 + $0x3b8] sm:$0xff]
    %v1447 = vld [vmem:[#allocation4 + $0x3c0] sm:$0xff]
    %v1448 = vld [vmem:[#allocation4 + $0x3c8] sm:$0xff]
    %v1449 = vld [vmem:[#allocation4 + $0x3d0] sm:$0xff]
    %v1450 = vld [vmem:[#allocation4 + $0x3d8] sm:$0xff]
    %v1451 = vld [vmem:[#allocation4 + $0x3e0] sm:$0xff]
    %v1452 = vld [vmem:[#allocation4 + $0x3e8] sm:$0xff]
    %v1453 = vld [vmem:[#allocation4 + $0x3f0] sm:$0xff]
    %v1454 = vld [vmem:[#allocation4 + $0x3f8] sm:$0xff]
    %v1583 = vunpack.c.l.b16 %v1327
    %v1584 = vunpack.c.h.b16 %v1327
    %v1585 = vunpack.c.l.b16 %v1328
    %v1586 = vunpack.c.h.b16 %v1328
    %v1587 = vunpack.c.l.b16 %v1329
    %v1588 = vunpack.c.h.b16 %v1329
    %v1589 = vunpack.c.l.b16 %v1330
    %v1590 = vunpack.c.h.b16 %v1330
    %v1591 = vunpack.c.l.b16 %v1331
    %v1592 = vunpack.c.h.b16 %v1331
    %v1593 = vunpack.c.l.b16 %v1332
    %v1594 = vunpack.c.h.b16 %v1332
    %v1595 = vunpack.c.l.b16 %v1333
    %v1596 = vunpack.c.h.b16 %v1333
    %v1597 = vunpack.c.l.b16 %v1334
    %v1598 = vunpack.c.h.b16 %v1334
    %v1599 = vunpack.c.l.b16 %v1335
    %v1600 = vunpack.c.h.b16 %v1335
    %v1601 = vunpack.c.l.b16 %v1336
    %v1602 = vunpack.c.h.b16 %v1336
    %v1603 = vunpack.c.l.b16 %v1337
    %v1604 = vunpack.c.h.b16 %v1337
    %v1605 = vunpack.c.l.b16 %v1338
    %v1606 = vunpack.c.h.b16 %v1338
    %v1607 = vunpack.c.l.b16 %v1339
    %v1608 = vunpack.c.h.b16 %v1339
    %v1609 = vunpack.c.l.b16 %v1340
    %v1610 = vunpack.c.h.b16 %v1340
    %v1611 = vunpack.c.l.b16 %v1341
    %v1612 = vunpack.c.h.b16 %v1341
    %v1613 = vunpack.c.l.b16 %v1342
    %v1614 = vunpack.c.h.b16 %v1342
    %v1615 = vunpack.c.l.b16 %v1343
    %v1616 = vunpack.c.h.b16 %v1343
    %v1617 = vunpack.c.l.b16 %v1344
    %v1618 = vunpack.c.h.b16 %v1344
    %v1619 = vunpack.c.l.b16 %v1345
    %v1620 = vunpack.c.h.b16 %v1345
    %v1621 = vunpack.c.l.b16 %v1346
    %v1622 = vunpack.c.h.b16 %v1346
    %v1623 = vunpack.c.l.b16 %v1347
    %v1624 = vunpack.c.h.b16 %v1347
    %v1625 = vunpack.c.l.b16 %v1348
    %v1626 = vunpack.c.h.b16 %v1348
    %v1627 = vunpack.c.l.b16 %v1349
    %v1628 = vunpack.c.h.b16 %v1349
    %v1629 = vunpack.c.l.b16 %v1350
    %v1630 = vunpack.c.h.b16 %v1350
    %v1631 = vunpack.c.l.b16 %v1351
    %v1632 = vunpack.c.h.b16 %v1351
    %v1633 = vunpack.c.l.b16 %v1352
    %v1634 = vunpack.c.h.b16 %v1352
    %v1635 = vunpack.c.l.b16 %v1353
    %v1636 = vunpack.c.h.b16 %v1353
    %v1637 = vunpack.c.l.b16 %v1354
    %v1638 = vunpack.c.h.b16 %v1354
    %v1639 = vunpack.c.l.b16 %v1355
    %v1640 = vunpack.c.h.b16 %v1355
    %v1641 = vunpack.c.l.b16 %v1356
    %v1642 = vunpack.c.h.b16 %v1356
    %v1643 = vunpack.c.l.b16 %v1357
    %v1644 = vunpack.c.h.b16 %v1357
    %v1645 = vunpack.c.l.b16 %v1358
    %v1646 = vunpack.c.h.b16 %v1358
    %v1647 = vunpack.c.l.b16 %v1359
    %v1648 = vunpack.c.h.b16 %v1359
    %v1649 = vunpack.c.l.b16 %v1360
    %v1650 = vunpack.c.h.b16 %v1360
    %v1651 = vunpack.c.l.b16 %v1361
    %v1652 = vunpack.c.h.b16 %v1361
    %v1653 = vunpack.c.l.b16 %v1362
    %v1654 = vunpack.c.h.b16 %v1362
    %v1655 = vunpack.c.l.b16 %v1363
    %v1656 = vunpack.c.h.b16 %v1363
    %v1657 = vunpack.c.l.b16 %v1364
    %v1658 = vunpack.c.h.b16 %v1364
    %v1659 = vunpack.c.l.b16 %v1365
    %v1660 = vunpack.c.h.b16 %v1365
    %v1661 = vunpack.c.l.b16 %v1366
    %v1662 = vunpack.c.h.b16 %v1366
    %v1663 = vunpack.c.l.b16 %v1367
    %v1664 = vunpack.c.h.b16 %v1367
    %v1665 = vunpack.c.l.b16 %v1368
    %v1666 = vunpack.c.h.b16 %v1368
    %v1667 = vunpack.c.l.b16 %v1369
    %v1668 = vunpack.c.h.b16 %v1369
    %v1669 = vunpack.c.l.b16 %v1370
    %v1670 = vunpack.c.h.b16 %v1370
    %v1671 = vunpack.c.l.b16 %v1371
    %v1672 = vunpack.c.h.b16 %v1371
    %v1673 = vunpack.c.l.b16 %v1372
    %v1674 = vunpack.c.h.b16 %v1372
    %v1675 = vunpack.c.l.b16 %v1373
    %v1676 = vunpack.c.h.b16 %v1373
    %v1677 = vunpack.c.l.b16 %v1374
    %v1678 = vunpack.c.h.b16 %v1374
    %v1679 = vunpack.c.l.b16 %v1375
    %v1680 = vunpack.c.h.b16 %v1375
    %v1681 = vunpack.c.l.b16 %v1376
    %v1682 = vunpack.c.h.b16 %v1376
    %v1683 = vunpack.c.l.b16 %v1377
    %v1684 = vunpack.c.h.b16 %v1377
    %v1685 = vunpack.c.l.b16 %v1378
    %v1686 = vunpack.c.h.b16 %v1378
    %v1687 = vunpack.c.l.b16 %v1379
    %v1688 = vunpack.c.h.b16 %v1379
    %v1689 = vunpack.c.l.b16 %v1380
    %v1690 = vunpack.c.h.b16 %v1380
    %v1691 = vunpack.c.l.b16 %v1381
    %v1692 = vunpack.c.h.b16 %v1381
    %v1693 = vunpack.c.l.b16 %v1382
    %v1694 = vunpack.c.h.b16 %v1382
    %v1695 = vunpack.c.l.b16 %v1383
    %v1696 = vunpack.c.h.b16 %v1383
    %v1697 = vunpack.c.l.b16 %v1384
    %v1698 = vunpack.c.h.b16 %v1384
    %v1699 = vunpack.c.l.b16 %v1385
    %v1700 = vunpack.c.h.b16 %v1385
    %v1701 = vunpack.c.l.b16 %v1386
    %v1702 = vunpack.c.h.b16 %v1386
    %v1703 = vunpack.c.l.b16 %v1387
    %v1704 = vunpack.c.h.b16 %v1387
    %v1705 = vunpack.c.l.b16 %v1388
    %v1706 = vunpack.c.h.b16 %v1388
    %v1707 = vunpack.c.l.b16 %v1389
    %v1708 = vunpack.c.h.b16 %v1389
    %v1709 = vunpack.c.l.b16 %v1390
    %v1710 = vunpack.c.h.b16 %v1390
    %v1711 = vunpack.c.l.b16 %v1391
    %v1712 = vunpack.c.h.b16 %v1391
    %v1713 = vunpack.c.l.b16 %v1392
    %v1714 = vunpack.c.h.b16 %v1392
    %v1715 = vunpack.c.l.b16 %v1393
    %v1716 = vunpack.c.h.b16 %v1393
    %v1717 = vunpack.c.l.b16 %v1394
    %v1718 = vunpack.c.h.b16 %v1394
    %v1719 = vunpack.c.l.b16 %v1395
    %v1720 = vunpack.c.h.b16 %v1395
    %v1721 = vunpack.c.l.b16 %v1396
    %v1722 = vunpack.c.h.b16 %v1396
    %v1723 = vunpack.c.l.b16 %v1397
    %v1724 = vunpack.c.h.b16 %v1397
    %v1725 = vunpack.c.l.b16 %v1398
    %v1726 = vunpack.c.h.b16 %v1398
    %v1727 = vunpack.c.l.b16 %v1399
    %v1728 = vunpack.c.h.b16 %v1399
    %v1729 = vunpack.c.l.b16 %v1400
    %v1730 = vunpack.c.h.b16 %v1400
    %v1731 = vunpack.c.l.b16 %v1401
    %v1732 = vunpack.c.h.b16 %v1401
    %v1733 = vunpack.c.l.b16 %v1402
    %v1734 = vunpack.c.h.b16 %v1402
    %v1735 = vunpack.c.l.b16 %v1403
    %v1736 = vunpack.c.h.b16 %v1403
    %v1737 = vunpack.c.l.b16 %v1404
    %v1738 = vunpack.c.h.b16 %v1404
    %v1739 = vunpack.c.l.b16 %v1405
    %v1740 = vunpack.c.h.b16 %v1405
    %v1741 = vunpack.c.l.b16 %v1406
    %v1742 = vunpack.c.h.b16 %v1406
    %v1743 = vunpack.c.l.b16 %v1407
    %v1744 = vunpack.c.h.b16 %v1407
    %v1745 = vunpack.c.l.b16 %v1408
    %v1746 = vunpack.c.h.b16 %v1408
    %v1747 = vunpack.c.l.b16 %v1409
    %v1748 = vunpack.c.h.b16 %v1409
    %v1749 = vunpack.c.l.b16 %v1410
    %v1750 = vunpack.c.h.b16 %v1410
    %v1751 = vunpack.c.l.b16 %v1411
    %v1752 = vunpack.c.h.b16 %v1411
    %v1753 = vunpack.c.l.b16 %v1412
    %v1754 = vunpack.c.h.b16 %v1412
    %v1755 = vunpack.c.l.b16 %v1413
    %v1756 = vunpack.c.h.b16 %v1413
    %v1757 = vunpack.c.l.b16 %v1414
    %v1758 = vunpack.c.h.b16 %v1414
    %v1759 = vunpack.c.l.b16 %v1415
    %v1760 = vunpack.c.h.b16 %v1415
    %v1761 = vunpack.c.l.b16 %v1416
    %v1762 = vunpack.c.h.b16 %v1416
    %v1763 = vunpack.c.l.b16 %v1417
    %v1764 = vunpack.c.h.b16 %v1417
    %v1765 = vunpack.c.l.b16 %v1418
    %v1766 = vunpack.c.h.b16 %v1418
    %v1767 = vunpack.c.l.b16 %v1419
    %v1768 = vunpack.c.h.b16 %v1419
    %v1769 = vunpack.c.l.b16 %v1420
    %v1770 = vunpack.c.h.b16 %v1420
    %v1771 = vunpack.c.l.b16 %v1421
    %v1772 = vunpack.c.h.b16 %v1421
    %v1773 = vunpack.c.l.b16 %v1422
    %v1774 = vunpack.c.h.b16 %v1422
    %v1775 = vunpack.c.l.b16 %v1423
    %v1776 = vunpack.c.h.b16 %v1423
    %v1777 = vunpack.c.l.b16 %v1424
    %v1778 = vunpack.c.h.b16 %v1424
    %v1779 = vunpack.c.l.b16 %v1425
    %v1780 = vunpack.c.h.b16 %v1425
    %v1781 = vunpack.c.l.b16 %v1426
    %v1782 = vunpack.c.h.b16 %v1426
    %v1783 = vunpack.c.l.b16 %v1427
    %v1784 = vunpack.c.h.b16 %v1427
    %v1785 = vunpack.c.l.b16 %v1428
    %v1786 = vunpack.c.h.b16 %v1428
    %v1787 = vunpack.c.l.b16 %v1429
    %v1788 = vunpack.c.h.b16 %v1429
    %v1789 = vunpack.c.l.b16 %v1430
    %v1790 = vunpack.c.h.b16 %v1430
    %v1791 = vunpack.c.l.b16 %v1431
    %v1792 = vunpack.c.h.b16 %v1431
    %v1793 = vunpack.c.l.b16 %v1432
    %v1794 = vunpack.c.h.b16 %v1432
    %v1795 = vunpack.c.l.b16 %v1433
    %v1796 = vunpack.c.h.b16 %v1433
    %v1797 = vunpack.c.l.b16 %v1434
    %v1798 = vunpack.c.h.b16 %v1434
    %v1799 = vunpack.c.l.b16 %v1435
    %v1800 = vunpack.c.h.b16 %v1435
    %v1801 = vunpack.c.l.b16 %v1436
    %v1802 = vunpack.c.h.b16 %v1436
    %v1803 = vunpack.c.l.b16 %v1437
    %v1804 = vunpack.c.h.b16 %v1437
    %v1805 = vunpack.c.l.b16 %v1438
    %v1806 = vunpack.c.h.b16 %v1438
    %v1807 = vunpack.c.l.b16 %v1439
    %v1808 = vunpack.c.h.b16 %v1439
    %v1809 = vunpack.c.l.b16 %v1440
    %v1810 = vunpack.c.h.b16 %v1440
    %v1811 = vunpack.c.l.b16 %v1441
    %v1812 = vunpack.c.h.b16 %v1441
    %v1813 = vunpack.c.l.b16 %v1442
    %v1814 = vunpack.c.h.b16 %v1442
    %v1815 = vunpack.c.l.b16 %v1443
    %v1816 = vunpack.c.h.b16 %v1443
    %v1817 = vunpack.c.l.b16 %v1444
    %v1818 = vunpack.c.h.b16 %v1444
    %v1819 = vunpack.c.l.b16 %v1445
    %v1820 = vunpack.c.h.b16 %v1445
    %v1821 = vunpack.c.l.b16 %v1446
    %v1822 = vunpack.c.h.b16 %v1446
    %v1823 = vunpack.c.l.b16 %v1447
    %v1824 = vunpack.c.h.b16 %v1447
    %v1825 = vunpack.c.l.b16 %v1448
    %v1826 = vunpack.c.h.b16 %v1448
    %v1827 = vunpack.c.l.b16 %v1449
    %v1828 = vunpack.c.h.b16 %v1449
    %v1829 = vunpack.c.l.b16 %v1450
    %v1830 = vunpack.c.h.b16 %v1450
    %v1831 = vunpack.c.l.b16 %v1451
    %v1832 = vunpack.c.h.b16 %v1451
    %v1833 = vunpack.c.l.b16 %v1452
    %v1834 = vunpack.c.h.b16 %v1452
    %v1835 = vunpack.c.l.b16 %v1453
    %v1836 = vunpack.c.h.b16 %v1453
    %v1837 = vunpack.c.l.b16 %v1454
    %v1838 = vunpack.c.h.b16 %v1454
    %v1839 = vpack.c.b16 %v1587, %v1583
    %v1840 = vpack.c.b16 %v1588, %v1584
    %v1841 = vpack.c.b16 %v1589, %v1585
    %v1842 = vpack.c.b16 %v1590, %v1586
    %v1843 = vpack.c.b16 %v1595, %v1591
    %v1844 = vpack.c.b16 %v1596, %v1592
    %v1845 = vpack.c.b16 %v1597, %v1593
    %v1846 = vpack.c.b16 %v1598, %v1594
    %v1847 = vpack.c.b16 %v1603, %v1599
    %v1848 = vpack.c.b16 %v1604, %v1600
    %v1849 = vpack.c.b16 %v1605, %v1601
    %v1850 = vpack.c.b16 %v1606, %v1602
    %v1851 = vpack.c.b16 %v1611, %v1607
    %v1852 = vpack.c.b16 %v1612, %v1608
    %v1853 = vpack.c.b16 %v1613, %v1609
    %v1854 = vpack.c.b16 %v1614, %v1610
    %v1855 = vpack.c.b16 %v1619, %v1615
    %v1856 = vpack.c.b16 %v1620, %v1616
    %v1857 = vpack.c.b16 %v1621, %v1617
    %v1858 = vpack.c.b16 %v1622, %v1618
    %v1859 = vpack.c.b16 %v1627, %v1623
    %v1860 = vpack.c.b16 %v1628, %v1624
    %v1861 = vpack.c.b16 %v1629, %v1625
    %v1862 = vpack.c.b16 %v1630, %v1626
    %v1863 = vpack.c.b16 %v1635, %v1631
    %v1864 = vpack.c.b16 %v1636, %v1632
    %v1865 = vpack.c.b16 %v1637, %v1633
    %v1866 = vpack.c.b16 %v1638, %v1634
    %v1867 = vpack.c.b16 %v1643, %v1639
    %v1868 = vpack.c.b16 %v1644, %v1640
    %v1869 = vpack.c.b16 %v1645, %v1641
    %v1870 = vpack.c.b16 %v1646, %v1642
    %v1871 = vpack.c.b16 %v1651, %v1647
    %v1872 = vpack.c.b16 %v1652, %v1648
    %v1873 = vpack.c.b16 %v1653, %v1649
    %v1874 = vpack.c.b16 %v1654, %v1650
    %v1875 = vpack.c.b16 %v1659, %v1655
    %v1876 = vpack.c.b16 %v1660, %v1656
    %v1877 = vpack.c.b16 %v1661, %v1657
    %v1878 = vpack.c.b16 %v1662, %v1658
    %v1879 = vpack.c.b16 %v1667, %v1663
    %v1880 = vpack.c.b16 %v1668, %v1664
    %v1881 = vpack.c.b16 %v1669, %v1665
    %v1882 = vpack.c.b16 %v1670, %v1666
    %v1883 = vpack.c.b16 %v1675, %v1671
    %v1884 = vpack.c.b16 %v1676, %v1672
    %v1885 = vpack.c.b16 %v1677, %v1673
    %v1886 = vpack.c.b16 %v1678, %v1674
    %v1887 = vpack.c.b16 %v1683, %v1679
    %v1888 = vpack.c.b16 %v1684, %v1680
    %v1889 = vpack.c.b16 %v1685, %v1681
    %v1890 = vpack.c.b16 %v1686, %v1682
    %v1891 = vpack.c.b16 %v1691, %v1687
    %v1892 = vpack.c.b16 %v1692, %v1688
    %v1893 = vpack.c.b16 %v1693, %v1689
    %v1894 = vpack.c.b16 %v1694, %v1690
    %v1895 = vpack.c.b16 %v1699, %v1695
    %v1896 = vpack.c.b16 %v1700, %v1696
    %v1897 = vpack.c.b16 %v1701, %v1697
    %v1898 = vpack.c.b16 %v1702, %v1698
    %v1899 = vpack.c.b16 %v1707, %v1703
    %v1900 = vpack.c.b16 %v1708, %v1704
    %v1901 = vpack.c.b16 %v1709, %v1705
    %v1902 = vpack.c.b16 %v1710, %v1706
    %v1903 = vpack.c.b16 %v1715, %v1711
    %v1904 = vpack.c.b16 %v1716, %v1712
    %v1905 = vpack.c.b16 %v1717, %v1713
    %v1906 = vpack.c.b16 %v1718, %v1714
    %v1907 = vpack.c.b16 %v1723, %v1719
    %v1908 = vpack.c.b16 %v1724, %v1720
    %v1909 = vpack.c.b16 %v1725, %v1721
    %v1910 = vpack.c.b16 %v1726, %v1722
    %v1911 = vpack.c.b16 %v1731, %v1727
    %v1912 = vpack.c.b16 %v1732, %v1728
    %v1913 = vpack.c.b16 %v1733, %v1729
    %v1914 = vpack.c.b16 %v1734, %v1730
    %v1915 = vpack.c.b16 %v1739, %v1735
    %v1916 = vpack.c.b16 %v1740, %v1736
    %v1917 = vpack.c.b16 %v1741, %v1737
    %v1918 = vpack.c.b16 %v1742, %v1738
    %v1919 = vpack.c.b16 %v1747, %v1743
    %v1920 = vpack.c.b16 %v1748, %v1744
    %v1921 = vpack.c.b16 %v1749, %v1745
    %v1922 = vpack.c.b16 %v1750, %v1746
    %v1923 = vpack.c.b16 %v1755, %v1751
    %v1924 = vpack.c.b16 %v1756, %v1752
    %v1925 = vpack.c.b16 %v1757, %v1753
    %v1926 = vpack.c.b16 %v1758, %v1754
    %v1927 = vpack.c.b16 %v1763, %v1759
    %v1928 = vpack.c.b16 %v1764, %v1760
    %v1929 = vpack.c.b16 %v1765, %v1761
    %v1930 = vpack.c.b16 %v1766, %v1762
    %v1931 = vpack.c.b16 %v1771, %v1767
    %v1932 = vpack.c.b16 %v1772, %v1768
    %v1933 = vpack.c.b16 %v1773, %v1769
    %v1934 = vpack.c.b16 %v1774, %v1770
    %v1935 = vpack.c.b16 %v1779, %v1775
    %v1936 = vpack.c.b16 %v1780, %v1776
    %v1937 = vpack.c.b16 %v1781, %v1777
    %v1938 = vpack.c.b16 %v1782, %v1778
    %v1939 = vpack.c.b16 %v1787, %v1783
    %v1940 = vpack.c.b16 %v1788, %v1784
    %v1941 = vpack.c.b16 %v1789, %v1785
    %v1942 = vpack.c.b16 %v1790, %v1786
    %v1943 = vpack.c.b16 %v1795, %v1791
    %v1944 = vpack.c.b16 %v1796, %v1792
    %v1945 = vpack.c.b16 %v1797, %v1793
    %v1946 = vpack.c.b16 %v1798, %v1794
    %v1947 = vpack.c.b16 %v1803, %v1799
    %v1948 = vpack.c.b16 %v1804, %v1800
    %v1949 = vpack.c.b16 %v1805, %v1801
    %v1950 = vpack.c.b16 %v1806, %v1802
    %v1951 = vpack.c.b16 %v1811, %v1807
    %v1952 = vpack.c.b16 %v1812, %v1808
    %v1953 = vpack.c.b16 %v1813, %v1809
    %v1954 = vpack.c.b16 %v1814, %v1810
    %v1955 = vpack.c.b16 %v1819, %v1815
    %v1956 = vpack.c.b16 %v1820, %v1816
    %v1957 = vpack.c.b16 %v1821, %v1817
    %v1958 = vpack.c.b16 %v1822, %v1818
    %v1959 = vpack.c.b16 %v1827, %v1823
    %v1960 = vpack.c.b16 %v1828, %v1824
    %v1961 = vpack.c.b16 %v1829, %v1825
    %v1962 = vpack.c.b16 %v1830, %v1826
    %v1963 = vpack.c.b16 %v1835, %v1831
    %v1964 = vpack.c.b16 %v1836, %v1832
    %v1965 = vpack.c.b16 %v1837, %v1833
    %v1966 = vpack.c.b16 %v1838, %v1834
    %2095 = vmatprep.subr.bf16.mxu0 %v1868
    %2096 = vmatpush1.bf16.msra.mxu0 %v1867
    %2097 = vmatprep.subr.bf16.mxu0 %v1864
    %2098 = vmatpush1.bf16.msra.mxu0 %v1863
    %2099 = vmatprep.subr.bf16.mxu0 %v1860
    %2100 = vmatpush1.bf16.msra.mxu0 %v1859
    %2101 = vmatprep.subr.bf16.mxu0 %v1856
    %2102 = vmatpush1.bf16.msra.mxu0 %v1855
    %2103 = vmatprep.subr.bf16.mxu0 %v1852
    %2104 = vmatpush1.bf16.msra.mxu0 %v1851
    %2105 = vmatprep.subr.bf16.mxu0 %v1848
    %2106 = vmatpush1.bf16.msra.mxu0 %v1847
    %2107 = vmatprep.subr.bf16.mxu0 %v1844
    %2108 = vmatpush1.bf16.msra.mxu0 %v1843
    %2109 = vmatprep.subr.bf16.mxu0 %v1840
    %2110 = vmatpush1.bf16.msra.mxu0 %v1839
    %2111 = vmatprep.subr.bf16.mxu0 %v1900
    %2112 = vmatpush2.bf16.msra.mxu0 %v1899
    %2113 = vmatprep.subr.bf16.mxu0 %v1896
    %2114 = vmatpush2.bf16.msra.mxu0 %v1895
    %2115 = vmatprep.subr.bf16.mxu0 %v1892
    %2116 = vmatpush2.bf16.msra.mxu0 %v1891
    %2117 = vmatprep.subr.bf16.mxu0 %v1888
    %2118 = vmatpush2.bf16.msra.mxu0 %v1887
    %2119 = vmatprep.subr.bf16.mxu0 %v1884
    %2120 = vmatpush2.bf16.msra.mxu0 %v1883
    %2121 = vmatprep.subr.bf16.mxu0 %v1880
    %2122 = vmatpush2.bf16.msra.mxu0 %v1879
    %2123 = vmatprep.subr.bf16.mxu0 %v1876
    %2124 = vmatpush2.bf16.msra.mxu0 %v1875
    %2125 = vmatprep.subr.bf16.mxu0 %v1872
    %2126 = vmatpush2.bf16.msra.mxu0 %v1871
    %2127 = vmatprep.mubr.bf16.mxu0 %v1324
    %2128 = vmatmul.mubr.bf16.gmra.mxu0 %v1323
    %v2129 = vpop.f32.mrf.mxu0
    %v2130 = vadd.f32 0.0, %v2129
    %v2131 = vpop.f32.mrf.mxu0
    %v2132 = vadd.f32 0.0, %v2131
    %v2133 = vpop.f32.mrf.mxu0
    %v2134 = vpop.f32.mrf.mxu0
    %2135 = vdwg.mxu0
    %2136 = vmatprep.subr.bf16.mxu0 %v1932
    %2137 = vmatpush1.bf16.msra.mxu0 %v1931
    %2138 = vmatprep.subr.bf16.mxu0 %v1928
    %2139 = vmatpush1.bf16.msra.mxu0 %v1927
    %2140 = vmatprep.subr.bf16.mxu0 %v1924
    %2141 = vmatpush1.bf16.msra.mxu0 %v1923
    %2142 = vmatprep.subr.bf16.mxu0 %v1920
    %2143 = vmatpush1.bf16.msra.mxu0 %v1919
    %2144 = vmatprep.subr.bf16.mxu0 %v1916
    %2145 = vmatpush1.bf16.msra.mxu0 %v1915
    %2146 = vmatprep.subr.bf16.mxu0 %v1912
    %2147 = vmatpush1.bf16.msra.mxu0 %v1911
    %2148 = vmatprep.subr.bf16.mxu0 %v1908
    %2149 = vmatpush1.bf16.msra.mxu0 %v1907
    %2150 = vmatprep.subr.bf16.mxu0 %v1904
    %2151 = vmatpush1.bf16.msra.mxu0 %v1903
    %2152 = vmatprep.subr.bf16.mxu0 %v1964
    %2153 = vmatpush2.bf16.msra.mxu0 %v1963
    %2154 = vmatprep.subr.bf16.mxu0 %v1960
    %2155 = vmatpush2.bf16.msra.mxu0 %v1959
    %2156 = vmatprep.subr.bf16.mxu0 %v1956
    %2157 = vmatpush2.bf16.msra.mxu0 %v1955
    %2158 = vmatprep.subr.bf16.mxu0 %v1952
    %2159 = vmatpush2.bf16.msra.mxu0 %v1951
    %2160 = vmatprep.subr.bf16.mxu0 %v1948
    %2161 = vmatpush2.bf16.msra.mxu0 %v1947
    %2162 = vmatprep.subr.bf16.mxu0 %v1944
    %2163 = vmatpush2.bf16.msra.mxu0 %v1943
    %2164 = vmatprep.subr.bf16.mxu0 %v1940
    %2165 = vmatpush2.bf16.msra.mxu0 %v1939
    %2166 = vmatprep.subr.bf16.mxu0 %v1936
    %2167 = vmatpush2.bf16.msra.mxu0 %v1935
    %2168 = vmatprep.mubr.bf16.mxu0 %v1326
    %2169 = vmatmul.mubr.bf16.gmra.mxu0 %v1325
    %v2170 = vpop.f32.mrf.mxu0
    %v2171 = vadd.f32 %v2130, %v2170
    %v2172 = vpop.f32.mrf.mxu0
    %v2173 = vadd.f32 %v2132, %v2172
    %v2174 = vpop.f32.mrf.mxu0
    %v2175 = vpop.f32.mrf.mxu0
    %2176 = vdwg.mxu0
    %2177 = vmatprep.subr.bf16.mxu0 %v1870
    %2178 = vmatpush1.bf16.msra.mxu0 %v1869
    %2179 = vmatprep.subr.bf16.mxu0 %v1866
    %2180 = vmatpush1.bf16.msra.mxu0 %v1865
    %2181 = vmatprep.subr.bf16.mxu0 %v1862
    %2182 = vmatpush1.bf16.msra.mxu0 %v1861
    %2183 = vmatprep.subr.bf16.mxu0 %v1858
    %2184 = vmatpush1.bf16.msra.mxu0 %v1857
    %2185 = vmatprep.subr.bf16.mxu0 %v1854
    %2186 = vmatpush1.bf16.msra.mxu0 %v1853
    %2187 = vmatprep.subr.bf16.mxu0 %v1850
    %2188 = vmatpush1.bf16.msra.mxu0 %v1849
    %2189 = vmatprep.subr.bf16.mxu0 %v1846
    %2190 = vmatpush1.bf16.msra.mxu0 %v1845
    %2191 = vmatprep.subr.bf16.mxu0 %v1842
    %2192 = vmatpush1.bf16.msra.mxu0 %v1841
    %2193 = vmatprep.subr.bf16.mxu0 %v1902
    %2194 = vmatpush2.bf16.msra.mxu0 %v1901
    %2195 = vmatprep.subr.bf16.mxu0 %v1898
    %2196 = vmatpush2.bf16.msra.mxu0 %v1897
    %2197 = vmatprep.subr.bf16.mxu0 %v1894
    %2198 = vmatpush2.bf16.msra.mxu0 %v1893
    %2199 = vmatprep.subr.bf16.mxu0 %v1890
    %2200 = vmatpush2.bf16.msra.mxu0 %v1889
    %2201 = vmatprep.subr.bf16.mxu0 %v1886
    %2202 = vmatpush2.bf16.msra.mxu0 %v1885
    %2203 = vmatprep.subr.bf16.mxu0 %v1882
    %2204 = vmatpush2.bf16.msra.mxu0 %v1881
    %2205 = vmatprep.subr.bf16.mxu0 %v1878
    %2206 = vmatpush2.bf16.msra.mxu0 %v1877
    %2207 = vmatprep.subr.bf16.mxu0 %v1874
    %2208 = vmatpush2.bf16.msra.mxu0 %v1873
    %2209 = vmatprep.mubr.bf16.mxu0 %v1324
    %2210 = vmatmul.mubr.bf16.gmra.mxu0 %v1323
    %v2211 = vpop.f32.mrf.mxu0
    %v2212 = vadd.f32 0.0, %v2211
    %v2213 = vpop.f32.mrf.mxu0
    %v2214 = vadd.f32 0.0, %v2213
    %v2215 = vpop.f32.mrf.mxu0
    %v2216 = vpop.f32.mrf.mxu0
    %2217 = vdwg.mxu0
    %2218 = vmatprep.subr.bf16.mxu0 %v1934
    %2219 = vmatpush1.bf16.msra.mxu0 %v1933
    %2220 = vmatprep.subr.bf16.mxu0 %v1930
    %2221 = vmatpush1.bf16.msra.mxu0 %v1929
    %2222 = vmatprep.subr.bf16.mxu0 %v1926
    %2223 = vmatpush1.bf16.msra.mxu0 %v1925
    %2224 = vmatprep.subr.bf16.mxu0 %v1922
    %2225 = vmatpush1.bf16.msra.mxu0 %v1921
    %2226 = vmatprep.subr.bf16.mxu0 %v1918
    %2227 = vmatpush1.bf16.msra.mxu0 %v1917
    %2228 = vmatprep.subr.bf16.mxu0 %v1914
    %2229 = vmatpush1.bf16.msra.mxu0 %v1913
    %2230 = vmatprep.subr.bf16.mxu0 %v1910
    %2231 = vmatpush1.bf16.msra.mxu0 %v1909
    %2232 = vmatprep.subr.bf16.mxu0 %v1906
    %2233 = vmatpush1.bf16.msra.mxu0 %v1905
    %2234 = vmatprep.subr.bf16.mxu0 %v1966
    %2235 = vmatpush2.bf16.msra.mxu0 %v1965
    %2236 = vmatprep.subr.bf16.mxu0 %v1962
    %2237 = vmatpush2.bf16.msra.mxu0 %v1961
    %2238 = vmatprep.subr.bf16.mxu0 %v1958
    %2239 = vmatpush2.bf16.msra.mxu0 %v1957
    %2240 = vmatprep.subr.bf16.mxu0 %v1954
    %2241 = vmatpush2.bf16.msra.mxu0 %v1953
    %2242 = vmatprep.subr.bf16.mxu0 %v1950
    %2243 = vmatpush2.bf16.msra.mxu0 %v1949
    %2244 = vmatprep.subr.bf16.mxu0 %v1946
    %2245 = vmatpush2.bf16.msra.mxu0 %v1945
    %2246 = vmatprep.subr.bf16.mxu0 %v1942
    %2247 = vmatpush2.bf16.msra.mxu0 %v1941
    %2248 = vmatprep.subr.bf16.mxu0 %v1938
    %2249 = vmatpush2.bf16.msra.mxu0 %v1937
    %2250 = vmatprep.mubr.bf16.mxu0 %v1326
    %2251 = vmatmul.mubr.bf16.gmra.mxu0 %v1325
    %v2252 = vpop.f32.mrf.mxu0
    %v2253 = vadd.f32 %v2212, %v2252
    %v2254 = vpop.f32.mrf.mxu0
    %v2255 = vadd.f32 %v2214, %v2254
    %v2256 = vpop.f32.mrf.mxu0
    %v2257 = vpop.f32.mrf.mxu0
    %2258 = vdwg.mxu0
    %v2259 = vld [vmem:[%s7] sm:$0xf]
    %v2260 = vld [vmem:[%s8] sm:$0xf]
    %v2261 = vsel %vm1163, %v2171, 0.0
    %v2262 = vrot.slane %v2261, 4
    %v2263 = vadd.f32 %v2261, %v2262
    %v2264 = vrot.slane %v2263, 2
    %v2265 = vadd.f32 %v2263, %v2264
    %v2266 = vrot.slane %v2265, 1
    %v2267 = vadd.f32 %v2265, %v2266
    %v2268 = vsel %vm1163, %v2173, 0.0
    %v2269 = vrot.slane %v2268, 4
    %v2270 = vadd.f32 %v2268, %v2269
    %v2271 = vrot.slane %v2270, 2
    %v2272 = vadd.f32 %v2270, %v2271
    %v2273 = vrot.slane %v2272, 1
    %v2274 = vadd.f32 %v2272, %v2273
    %v2275 = vsel %vm1163, %v2253, 0.0
    %v2276 = vrot.slane %v2275, 4
    %v2277 = vadd.f32 %v2275, %v2276
    %v2278 = vrot.slane %v2277, 2
    %v2279 = vadd.f32 %v2277, %v2278
    %v2280 = vrot.slane %v2279, 1
    %v2281 = vadd.f32 %v2279, %v2280
    %v2282 = vsel %vm1163, %v2255, 0.0
    %v2283 = vrot.slane %v2282, 4
    %v2284 = vadd.f32 %v2282, %v2283
    %v2285 = vrot.slane %v2284, 2
    %v2286 = vadd.f32 %v2284, %v2285
    %v2287 = vrot.slane %v2286, 1
    %v2288 = vadd.f32 %v2286, %v2287
    %2289 = vrot.lane.b32.xlu0 %v2267, 64
    %v2290 = vpop.permute.xlu0 %2289
    %2291 = vrot.lane.b32.xlu0 %v2274, 64
    %v2292 = vpop.permute.xlu0 %2291
    %2293 = vrot.lane.b32.xlu0 %v2281, 64
    %v2294 = vpop.permute.xlu0 %2293
    %2295 = vrot.lane.b32.xlu0 %v2288, 64
    %v2296 = vpop.permute.xlu0 %2295
    %v2297 = vlaneseq
    %v2298 = vand.u32 %v2297, 127
    %vm2299 = vcmp.lt.s32.totalorder %v2298, 64
    %v2300 = vsel %vm2299, %v2294, %v2296
    %v2301 = vsel %vm2299, %v2292, %v2294
    %v2302 = vsel %vm2299, %v2290, %v2292
    %v2303 = vsel %vm2299, %v2296, %v2290
    %v2304 = vadd.f32 %v2267, %v2303
    %v2305 = vadd.f32 %v2274, %v2302
    %v2306 = vadd.f32 %v2281, %v2301
    %v2307 = vadd.f32 %v2288, %v2300
    %v2308 = vadd.f32 %v2304, %v2307
    %v2309 = vadd.f32 %v2305, %v2304
    %v2310 = vadd.f32 %v2306, %v2305
    %v2311 = vadd.f32 %v2307, %v2306
    %v2312 = vadd.f32 %v2308, %v2310
    %v2313 = vadd.f32 %v2309, %v2311
    %v2314 = vrcp.pop 16.0
    %v2315 = vmul.f32 %v2312, %v2314
    %v2316 = vmul.f32 %v2313, %v2314
    %v2317 = vlaneseq
    %v2318 = vshrl.u32 %v2317, 7
    %v2319 = vsub.s32 0, %v2318
    %v2320 = vrot.slane %v2315, %v2319
    %v2321 = vlaneseq
    %v2322 = vshrl.u32 %v2321, 7
    %v2323 = vsub.s32 0, %v2322
    %v2324 = vrot.slane %v2316, %v2323
    %v2325 = vsub.f32 %v2171, %v2320
    %v2326 = vsub.f32 %v2173, %v2324
    %v2327 = vsub.f32 %v2253, %v2320
    %v2328 = vsub.f32 %v2255, %v2324
    %v2329 = vmul.f32 %v2325, %v2325
    %v2330 = vmul.f32 %v2326, %v2326
    %v2331 = vmul.f32 %v2327, %v2327
    %v2332 = vmul.f32 %v2328, %v2328
    %v2333 = vsel %vm1163, %v2329, 0.0
    %v2334 = vrot.slane %v2333, 4
    %v2335 = vadd.f32 %v2333, %v2334
    %v2336 = vrot.slane %v2335, 2
    %v2337 = vadd.f32 %v2335, %v2336
    %v2338 = vrot.slane %v2337, 1
    %v2339 = vadd.f32 %v2337, %v2338
    %v2340 = vsel %vm1163, %v2330, 0.0
    %v2341 = vrot.slane %v2340, 4
    %v2342 = vadd.f32 %v2340, %v2341
    %v2343 = vrot.slane %v2342, 2
    %v2344 = vadd.f32 %v2342, %v2343
    %v2345 = vrot.slane %v2344, 1
    %v2346 = vadd.f32 %v2344, %v2345
    %v2347 = vsel %vm1163, %v2331, 0.0
    %v2348 = vrot.slane %v2347, 4
    %v2349 = vadd.f32 %v2347, %v2348
    %v2350 = vrot.slane %v2349, 2
    %v2351 = vadd.f32 %v2349, %v2350
    %v2352 = vrot.slane %v2351, 1
    %v2353 = vadd.f32 %v2351, %v2352
    %v2354 = vsel %vm1163, %v2332, 0.0
    %v2355 = vrot.slane %v2354, 4
    %v2356 = vadd.f32 %v2354, %v2355
    %v2357 = vrot.slane %v2356, 2
    %v2358 = vadd.f32 %v2356, %v2357
    %v2359 = vrot.slane %v2358, 1
    %v2360 = vadd.f32 %v2358, %v2359
    %2361 = vrot.lane.b32.xlu0 %v2339, 64
    %v2362 = vpop.permute.xlu0 %2361
    %2363 = vrot.lane.b32.xlu0 %v2346, 64
    %v2364 = vpop.permute.xlu0 %2363
    %2365 = vrot.lane.b32.xlu0 %v2353, 64
    %v2366 = vpop.permute.xlu0 %2365
    %2367 = vrot.lane.b32.xlu0 %v2360, 64
    %v2368 = vpop.permute.xlu0 %2367
    %v2369 = vsel %vm2299, %v2366, %v2368
    %v2370 = vsel %vm2299, %v2364, %v2366
    %v2371 = vsel %vm2299, %v2362, %v2364
    %v2372 = vsel %vm2299, %v2368, %v2362
    %v2373 = vadd.f32 %v2339, %v2372
    %v2374 = vadd.f32 %v2346, %v2371
    %v2375 = vadd.f32 %v2353, %v2370
    %v2376 = vadd.f32 %v2360, %v2369
    %v2377 = vadd.f32 %v2373, %v2376
    %v2378 = vadd.f32 %v2374, %v2373
    %v2379 = vadd.f32 %v2375, %v2374
    %v2380 = vadd.f32 %v2376, %v2375
    %v2381 = vadd.f32 %v2377, %v2379
    %v2382 = vadd.f32 %v2378, %v2380
    %v2383 = vmul.f32 %v2381, %v2314
    %v2384 = vmul.f32 %v2382, %v2314
    %v2385 = vadd.f32 %v2383, 1e-05
    %v2386 = vadd.f32 %v2384, 1e-05
    %v2387 = vrsqrt.pop %v2385
    %v2388 = vrsqrt.pop %v2386
    %v2389 = vlaneseq
    %v2390 = vshrl.u32 %v2389, 7
    %v2391 = vsub.s32 0, %v2390
    %v2392 = vrot.slane %v2387, %v2391
    %v2393 = vlaneseq
    %v2394 = vshrl.u32 %v2393, 7
    %v2395 = vsub.s32 0, %v2394
    %v2396 = vrot.slane %v2388, %v2395
    %v2397 = vmul.f32 %v2325, %v2392
    %v2398 = vmul.f32 %v2326, %v2396
    %v2399 = vmul.f32 %v2327, %v2392
    %v2400 = vmul.f32 %v2328, %v2396
    %v2402 = vlaneseq
    %v2403 = vshrl.u32 %v2402, 7
    %v2404 = vsub.s32 0, %v2403
    %v2405 = vrot.slane %v2259, %v2404
    %v2406 = vlaneseq
    %v2407 = vshrl.u32 %v2406, 7
    %v2408 = vsub.s32 1, %v2407
    %v2409 = vrot.slane %v2259, %v2408
    %v2410 = vlaneseq
    %v2411 = vshrl.u32 %v2410, 7
    %v2412 = vsub.s32 2, %v2411
    %v2413 = vrot.slane %v2259, %v2412
    %v2414 = vlaneseq
    %v2415 = vshrl.u32 %v2414, 7
    %v2416 = vsub.s32 3, %v2415
    %v2417 = vrot.slane %v2259, %v2416
    %v2422 = vmul.f32 %v2397, %v2405
    %v2423 = vmul.f32 %v2398, %v2409
    %v2424 = vmul.f32 %v2399, %v2413
    %v2425 = vmul.f32 %v2400, %v2417
    %v2427 = vlaneseq
    %v2428 = vshrl.u32 %v2427, 7
    %v2429 = vsub.s32 0, %v2428
    %v2430 = vrot.slane %v2260, %v2429
    %v2431 = vlaneseq
    %v2432 = vshrl.u32 %v2431, 7
    %v2433 = vsub.s32 1, %v2432
    %v2434 = vrot.slane %v2260, %v2433
    %v2435 = vlaneseq
    %v2436 = vshrl.u32 %v2435, 7
    %v2437 = vsub.s32 2, %v2436
    %v2438 = vrot.slane %v2260, %v2437
    %v2439 = vlaneseq
    %v2440 = vshrl.u32 %v2439, 7
    %v2441 = vsub.s32 3, %v2440
    %v2442 = vrot.slane %v2260, %v2441
    %v2447 = vadd.f32 %v2422, %v2430
    %v2448 = vadd.f32 %v2423, %v2434
    %v2449 = vadd.f32 %v2424, %v2438
    %v2450 = vadd.f32 %v2425, %v2442
    %v2451 = vmax.f32 %v2447, 0.0
    %v2452 = vmax.f32 %v2448, 0.0
    %v2453 = vmax.f32 %v2449, 0.0
    %v2454 = vmax.f32 %v2450, 0.0
    %v2455 = vpack.c.bf16 %v2451, %v2451
    %v2456 = vpack.c.bf16 %v2452, %v2452
    %v2457 = vpack.c.bf16 %v2453, %v2453
    %v2458 = vpack.c.bf16 %v2454, %v2454
    %v2459 = vld [vmem:[%s9] sm:$0xf]
    %v2460 = vld [vmem:[%s9 + $0x4] sm:$0xf]
    %v2461 = vld [vmem:[%s9 + $0x8] sm:$0xf]
    %v2462 = vld [vmem:[%s9 + $0xc] sm:$0xf]
    %v2463 = vld [vmem:[%s9 + $0x10] sm:$0xf]
    %v2464 = vld [vmem:[%s9 + $0x14] sm:$0xf]
    %v2465 = vld [vmem:[%s9 + $0x18] sm:$0xf]
    %v2466 = vld [vmem:[%s9 + $0x1c] sm:$0xf]
    %v2467 = vld [vmem:[%s9 + $0x20] sm:$0xf]
    %v2468 = vld [vmem:[%s9 + $0x24] sm:$0xf]
    %v2469 = vld [vmem:[%s9 + $0x28] sm:$0xf]
    %v2470 = vld [vmem:[%s9 + $0x2c] sm:$0xf]
    %v2471 = vld [vmem:[%s9 + $0x30] sm:$0xf]
    %v2472 = vld [vmem:[%s9 + $0x34] sm:$0xf]
    %v2473 = vld [vmem:[%s9 + $0x38] sm:$0xf]
    %v2474 = vld [vmem:[%s9 + $0x3c] sm:$0xf]
    %v2475 = vld [vmem:[%s9 + $0x40] sm:$0xf]
    %v2476 = vld [vmem:[%s9 + $0x44] sm:$0xf]
    %v2477 = vld [vmem:[%s9 + $0x48] sm:$0xf]
    %v2478 = vld [vmem:[%s9 + $0x4c] sm:$0xf]
    %v2479 = vld [vmem:[%s9 + $0x50] sm:$0xf]
    %v2480 = vld [vmem:[%s9 + $0x54] sm:$0xf]
    %v2481 = vld [vmem:[%s9 + $0x58] sm:$0xf]
    %v2482 = vld [vmem:[%s9 + $0x5c] sm:$0xf]
    %v2483 = vld [vmem:[%s9 + $0x60] sm:$0xf]
    %v2484 = vld [vmem:[%s9 + $0x64] sm:$0xf]
    %v2485 = vld [vmem:[%s9 + $0x68] sm:$0xf]
    %v2486 = vld [vmem:[%s9 + $0x6c] sm:$0xf]
    %v2487 = vld [vmem:[%s9 + $0x70] sm:$0xf]
    %v2488 = vld [vmem:[%s9 + $0x74] sm:$0xf]
    %v2489 = vld [vmem:[%s9 + $0x78] sm:$0xf]
    %v2490 = vld [vmem:[%s9 + $0x7c] sm:$0xf]
    %v2491 = vld [vmem:[%s9 + $0x80] sm:$0xf]
    %v2492 = vld [vmem:[%s9 + $0x84] sm:$0xf]
    %v2493 = vld [vmem:[%s9 + $0x88] sm:$0xf]
    %v2494 = vld [vmem:[%s9 + $0x8c] sm:$0xf]
    %v2495 = vld [vmem:[%s9 + $0x90] sm:$0xf]
    %v2496 = vld [vmem:[%s9 + $0x94] sm:$0xf]
    %v2497 = vld [vmem:[%s9 + $0x98] sm:$0xf]
    %v2498 = vld [vmem:[%s9 + $0x9c] sm:$0xf]
    %v2499 = vld [vmem:[%s9 + $0xa0] sm:$0xf]
    %v2500 = vld [vmem:[%s9 + $0xa4] sm:$0xf]
    %v2501 = vld [vmem:[%s9 + $0xa8] sm:$0xf]
    %v2502 = vld [vmem:[%s9 + $0xac] sm:$0xf]
    %v2503 = vld [vmem:[%s9 + $0xb0] sm:$0xf]
    %v2504 = vld [vmem:[%s9 + $0xb4] sm:$0xf]
    %v2505 = vld [vmem:[%s9 + $0xb8] sm:$0xf]
    %v2506 = vld [vmem:[%s9 + $0xbc] sm:$0xf]
    %v2507 = vld [vmem:[%s9 + $0xc0] sm:$0xf]
    %v2508 = vld [vmem:[%s9 + $0xc4] sm:$0xf]
    %v2509 = vld [vmem:[%s9 + $0xc8] sm:$0xf]
    %v2510 = vld [vmem:[%s9 + $0xcc] sm:$0xf]
    %v2511 = vld [vmem:[%s9 + $0xd0] sm:$0xf]
    %v2512 = vld [vmem:[%s9 + $0xd4] sm:$0xf]
    %v2513 = vld [vmem:[%s9 + $0xd8] sm:$0xf]
    %v2514 = vld [vmem:[%s9 + $0xdc] sm:$0xf]
    %v2515 = vld [vmem:[%s9 + $0xe0] sm:$0xf]
    %v2516 = vld [vmem:[%s9 + $0xe4] sm:$0xf]
    %v2517 = vld [vmem:[%s9 + $0xe8] sm:$0xf]
    %v2518 = vld [vmem:[%s9 + $0xec] sm:$0xf]
    %v2519 = vld [vmem:[%s9 + $0xf0] sm:$0xf]
    %v2520 = vld [vmem:[%s9 + $0xf4] sm:$0xf]
    %v2521 = vld [vmem:[%s9 + $0xf8] sm:$0xf]
    %v2522 = vld [vmem:[%s9 + $0xfc] sm:$0xf]
    %v2523 = vld [vmem:[%s10] sm:$0x1]
    %v2525 = vlaneseq
    %v2526 = vshrl.u32 %v2525, 7
    %v2527 = vsub.s32 0, %v2526
    %v2528 = vrot.slane %v2523, %v2527
    %v2594 = vunpack.c.l.b16 %v2459
    %v2595 = vunpack.c.l.b16 %v2460
    %v2596 = vunpack.c.l.b16 %v2461
    %v2597 = vunpack.c.l.b16 %v2462
    %v2598 = vunpack.c.l.b16 %v2463
    %v2599 = vunpack.c.l.b16 %v2464
    %v2600 = vunpack.c.l.b16 %v2465
    %v2601 = vunpack.c.l.b16 %v2466
    %v2602 = vunpack.c.l.b16 %v2467
    %v2603 = vunpack.c.l.b16 %v2468
    %v2604 = vunpack.c.l.b16 %v2469
    %v2605 = vunpack.c.l.b16 %v2470
    %v2606 = vunpack.c.l.b16 %v2471
    %v2607 = vunpack.c.l.b16 %v2472
    %v2608 = vunpack.c.l.b16 %v2473
    %v2609 = vunpack.c.l.b16 %v2474
    %v2610 = vunpack.c.l.b16 %v2475
    %v2611 = vunpack.c.l.b16 %v2476
    %v2612 = vunpack.c.l.b16 %v2477
    %v2613 = vunpack.c.l.b16 %v2478
    %v2614 = vunpack.c.l.b16 %v2479
    %v2615 = vunpack.c.l.b16 %v2480
    %v2616 = vunpack.c.l.b16 %v2481
    %v2617 = vunpack.c.l.b16 %v2482
    %v2618 = vunpack.c.l.b16 %v2483
    %v2619 = vunpack.c.l.b16 %v2484
    %v2620 = vunpack.c.l.b16 %v2485
    %v2621 = vunpack.c.l.b16 %v2486
    %v2622 = vunpack.c.l.b16 %v2487
    %v2623 = vunpack.c.l.b16 %v2488
    %v2624 = vunpack.c.l.b16 %v2489
    %v2625 = vunpack.c.l.b16 %v2490
    %v2626 = vunpack.c.l.b16 %v2491
    %v2627 = vunpack.c.l.b16 %v2492
    %v2628 = vunpack.c.l.b16 %v2493
    %v2629 = vunpack.c.l.b16 %v2494
    %v2630 = vunpack.c.l.b16 %v2495
    %v2631 = vunpack.c.l.b16 %v2496
    %v2632 = vunpack.c.l.b16 %v2497
    %v2633 = vunpack.c.l.b16 %v2498
    %v2634 = vunpack.c.l.b16 %v2499
    %v2635 = vunpack.c.l.b16 %v2500
    %v2636 = vunpack.c.l.b16 %v2501
    %v2637 = vunpack.c.l.b16 %v2502
    %v2638 = vunpack.c.l.b16 %v2503
    %v2639 = vunpack.c.l.b16 %v2504
    %v2640 = vunpack.c.l.b16 %v2505
    %v2641 = vunpack.c.l.b16 %v2506
    %v2642 = vunpack.c.l.b16 %v2507
    %v2643 = vunpack.c.l.b16 %v2508
    %v2644 = vunpack.c.l.b16 %v2509
    %v2645 = vunpack.c.l.b16 %v2510
    %v2646 = vunpack.c.l.b16 %v2511
    %v2647 = vunpack.c.l.b16 %v2512
    %v2648 = vunpack.c.l.b16 %v2513
    %v2649 = vunpack.c.l.b16 %v2514
    %v2650 = vunpack.c.l.b16 %v2515
    %v2651 = vunpack.c.l.b16 %v2516
    %v2652 = vunpack.c.l.b16 %v2517
    %v2653 = vunpack.c.l.b16 %v2518
    %v2654 = vunpack.c.l.b16 %v2519
    %v2655 = vunpack.c.l.b16 %v2520
    %v2656 = vunpack.c.l.b16 %v2521
    %v2657 = vunpack.c.l.b16 %v2522
    %v2658 = vpack.c.b16 %v2595, %v2594
    %v2659 = vpack.c.b16 %v2597, %v2596
    %v2660 = vpack.c.b16 %v2599, %v2598
    %v2661 = vpack.c.b16 %v2601, %v2600
    %v2662 = vpack.c.b16 %v2603, %v2602
    %v2663 = vpack.c.b16 %v2605, %v2604
    %v2664 = vpack.c.b16 %v2607, %v2606
    %v2665 = vpack.c.b16 %v2609, %v2608
    %v2666 = vpack.c.b16 %v2611, %v2610
    %v2667 = vpack.c.b16 %v2613, %v2612
    %v2668 = vpack.c.b16 %v2615, %v2614
    %v2669 = vpack.c.b16 %v2617, %v2616
    %v2670 = vpack.c.b16 %v2619, %v2618
    %v2671 = vpack.c.b16 %v2621, %v2620
    %v2672 = vpack.c.b16 %v2623, %v2622
    %v2673 = vpack.c.b16 %v2625, %v2624
    %v2674 = vpack.c.b16 %v2627, %v2626
    %v2675 = vpack.c.b16 %v2629, %v2628
    %v2676 = vpack.c.b16 %v2631, %v2630
    %v2677 = vpack.c.b16 %v2633, %v2632
    %v2678 = vpack.c.b16 %v2635, %v2634
    %v2679 = vpack.c.b16 %v2637, %v2636
    %v2680 = vpack.c.b16 %v2639, %v2638
    %v2681 = vpack.c.b16 %v2641, %v2640
    %v2682 = vpack.c.b16 %v2643, %v2642
    %v2683 = vpack.c.b16 %v2645, %v2644
    %v2684 = vpack.c.b16 %v2647, %v2646
    %v2685 = vpack.c.b16 %v2649, %v2648
    %v2686 = vpack.c.b16 %v2651, %v2650
    %v2687 = vpack.c.b16 %v2653, %v2652
    %v2688 = vpack.c.b16 %v2655, %v2654
    %v2689 = vpack.c.b16 %v2657, %v2656
    %2722 = vmatprep.subr.bf16.mxu0 0
    %2723 = vmatpush1.bf16.msra.mxu0 %v2665
    %2724 = vmatprep.subr.bf16.mxu0 0
    %2725 = vmatpush1.bf16.msra.mxu0 %v2664
    %2726 = vmatprep.subr.bf16.mxu0 0
    %2727 = vmatpush1.bf16.msra.mxu0 %v2663
    %2728 = vmatprep.subr.bf16.mxu0 0
    %2729 = vmatpush1.bf16.msra.mxu0 %v2662
    %2730 = vmatprep.subr.bf16.mxu0 0
    %2731 = vmatpush1.bf16.msra.mxu0 %v2661
    %2732 = vmatprep.subr.bf16.mxu0 0
    %2733 = vmatpush1.bf16.msra.mxu0 %v2660
    %2734 = vmatprep.subr.bf16.mxu0 0
    %2735 = vmatpush1.bf16.msra.mxu0 %v2659
    %2736 = vmatprep.subr.bf16.mxu0 0
    %2737 = vmatpush1.bf16.msra.mxu0 %v2658
    %2738 = vmatprep.subr.bf16.mxu0 0
    %2739 = vmatpush2.bf16.msra.mxu0 %v2673
    %2740 = vmatprep.subr.bf16.mxu0 0
    %2741 = vmatpush2.bf16.msra.mxu0 %v2672
    %2742 = vmatprep.subr.bf16.mxu0 0
    %2743 = vmatpush2.bf16.msra.mxu0 %v2671
    %2744 = vmatprep.subr.bf16.mxu0 0
    %2745 = vmatpush2.bf16.msra.mxu0 %v2670
    %2746 = vmatprep.subr.bf16.mxu0 0
    %2747 = vmatpush2.bf16.msra.mxu0 %v2669
    %2748 = vmatprep.subr.bf16.mxu0 0
    %2749 = vmatpush2.bf16.msra.mxu0 %v2668
    %2750 = vmatprep.subr.bf16.mxu0 0
    %2751 = vmatpush2.bf16.msra.mxu0 %v2667
    %2752 = vmatprep.subr.bf16.mxu0 0
    %2753 = vmatpush2.bf16.msra.mxu0 %v2666
    %2754 = vmatprep.mubr.bf16.mxu0 %v2456
    %2755 = vmatmul.mubr.bf16.gmra.mxu0 %v2455
    %v2756 = vpop.f32.mrf.mxu0
    %v2757 = vadd.f32 %v2528, %v2756
    %v2758 = vpop.f32.mrf.mxu0
    %v2759 = vpop.f32.mrf.mxu0
    %v2760 = vpop.f32.mrf.mxu0
    %2761 = vdwg.mxu0
    %2762 = vmatprep.subr.bf16.mxu0 0
    %2763 = vmatpush1.bf16.msra.mxu0 %v2681
    %2764 = vmatprep.subr.bf16.mxu0 0
    %2765 = vmatpush1.bf16.msra.mxu0 %v2680
    %2766 = vmatprep.subr.bf16.mxu0 0
    %2767 = vmatpush1.bf16.msra.mxu0 %v2679
    %2768 = vmatprep.subr.bf16.mxu0 0
    %2769 = vmatpush1.bf16.msra.mxu0 %v2678
    %2770 = vmatprep.subr.bf16.mxu0 0
    %2771 = vmatpush1.bf16.msra.mxu0 %v2677
    %2772 = vmatprep.subr.bf16.mxu0 0
    %2773 = vmatpush1.bf16.msra.mxu0 %v2676
    %2774 = vmatprep.subr.bf16.mxu0 0
    %2775 = vmatpush1.bf16.msra.mxu0 %v2675
    %2776 = vmatprep.subr.bf16.mxu0 0
    %2777 = vmatpush1.bf16.msra.mxu0 %v2674
    %2778 = vmatprep.subr.bf16.mxu0 0
    %2779 = vmatpush2.bf16.msra.mxu0 %v2689
    %2780 = vmatprep.subr.bf16.mxu0 0
    %2781 = vmatpush2.bf16.msra.mxu0 %v2688
    %2782 = vmatprep.subr.bf16.mxu0 0
    %2783 = vmatpush2.bf16.msra.mxu0 %v2687
    %2784 = vmatprep.subr.bf16.mxu0 0
    %2785 = vmatpush2.bf16.msra.mxu0 %v2686
    %2786 = vmatprep.subr.bf16.mxu0 0
    %2787 = vmatpush2.bf16.msra.mxu0 %v2685
    %2788 = vmatprep.subr.bf16.mxu0 0
    %2789 = vmatpush2.bf16.msra.mxu0 %v2684
    %2790 = vmatprep.subr.bf16.mxu0 0
    %2791 = vmatpush2.bf16.msra.mxu0 %v2683
    %2792 = vmatprep.subr.bf16.mxu0 0
    %2793 = vmatpush2.bf16.msra.mxu0 %v2682
    %2794 = vmatprep.mubr.bf16.mxu0 %v2458
    %2795 = vmatmul.mubr.bf16.gmra.mxu0 %v2457
    %v2796 = vpop.f32.mrf.mxu0
    %v2797 = vadd.f32 %v2757, %v2796
    %v2798 = vpop.f32.mrf.mxu0
    %v2799 = vpop.f32.mrf.mxu0
    %v2800 = vpop.f32.mrf.mxu0
    %2801 = vdwg.mxu0
    %vm2802 = vcmask 1048064
    %2803 = vrot.lane.b32.xlu0 %v2797, 64
    %v2804 = vpop.permute.xlu0 %2803
    %v2805 = vsel %vm2802, %v2804, %v2797
    %2806 = vrot.lane.b32.xlu0 %v2805, 64
    %v2807 = vpop.permute.xlu0 %2806
    %v2808 = vsel %vm2802, %v2807, %v2797
    %2810 = vrot.lane.b32.xlu0 %v2808, 80
    %v2811 = vpop.permute.xlu0 %2810
    %v2813 = vmax.f32 %v2797, %v2811
    %2814 = vrot.lane.b32.xlu0 %v2813, 64
    %v2815 = vpop.permute.xlu0 %2814
    %v2816 = vsel %vm2802, %v2815, %v2813
    %2817 = vrot.lane.b32.xlu0 %v2816, 64
    %v2818 = vpop.permute.xlu0 %2817
    %v2819 = vsel %vm2802, %v2818, %v2813
    %2821 = vrot.lane.b32.xlu0 %v2819, 96
    %v2822 = vpop.permute.xlu0 %2821
    %v2824 = vmax.f32 %v2813, %v2822
    %v2825 = vsub.f32 %v2797, %v2824
    %v2826 = vmul.f32 %v2825, 1.442695
    %v2827 = vpow.pop %v2826
    %2828 = vrot.lane.b32.xlu0 %v2827, 64
    %v2829 = vpop.permute.xlu0 %2828
    %v2830 = vsel %vm2802, %v2829, %v2827
    %2831 = vrot.lane.b32.xlu0 %v2830, 64
    %v2832 = vpop.permute.xlu0 %2831
    %v2833 = vsel %vm2802, %v2832, %v2827
    %2835 = vrot.lane.b32.xlu0 %v2833, 80
    %v2836 = vpop.permute.xlu0 %2835
    %v2838 = vadd.f32 %v2827, %v2836
    %2839 = vrot.lane.b32.xlu0 %v2838, 64
    %v2840 = vpop.permute.xlu0 %2839
    %v2841 = vsel %vm2802, %v2840, %v2838
    %2842 = vrot.lane.b32.xlu0 %v2841, 64
    %v2843 = vpop.permute.xlu0 %2842
    %v2844 = vsel %vm2802, %v2843, %v2838
    %2846 = vrot.lane.b32.xlu0 %v2844, 96
    %v2847 = vpop.permute.xlu0 %2846
    %v2849 = vadd.f32 %v2838, %v2847
    %v2850 = vrcp.pop %v2849
    %v2851 = vmul.f32 %v2827, %v2850
    %vm2852 = vcmask 517120
    %2853 = vst.msk [vmem:[%s11] sm:$0x3] %vm2852, %v2851
    // Predicated region
    $region54: #{cnn_generator_forward.1} parent=1 // pred_check
      _
    $region55: #{cnn_generator_forward.1} parent=1 // pred_check_branch
      %2855 = sbr.rel (0) target = $region57
    $region56: #{cnn_generator_forward.1} parent=1 // pred_region
      _
    $region57: #{cnn_generator_forward.1} parent=1 // pred_fallthru
      _
    // Predicated region
    $region58: #{cnn_generator_forward.1} parent=1 // pred_check
      _
    $region59: #{cnn_generator_forward.1} parent=1 // pred_check_branch
      %2857 = sbr.rel (0) target = $region61
    $region60: #{cnn_generator_forward.1} parent=1 // pred_region
      _
    $region61: #{cnn_generator_forward.1} parent=1 // pred_fallthru
      _
    %2858 = vsyncpa [#allocation3], 1
    %2859 = vsyncpa [#allocation5], 1

</llo_original>
